<compile_context>
chip_gen: v7x
topology: tpu7x:2x2x1
jax: 0.10.0
libtpu: 0.0.40
codegen_flags: <defaults>
</compile_context>

<pallas_src>
import jax
import jax.numpy as jnp
from jax.experimental import pallas as pl
from jax.experimental.pallas import tpu as pltpu

IN_FEATURES = 3 * 40 * 40   # 4800
NUM_CLASSES = 10
PADDED_CLASSES = 128        # lane-dense output width (multiple of 128)
NEG_PAD = -1e30             # f32 bias for padded class lanes (would overflow in bf16)


def _round_up(x, m):
    return ((x + m - 1) // m) * m


def _one_layer_kernel(x_ref, w_ref, b_ref, o_ref):
    # x_ref: (tb, 4800) f32 or bf16 | w_ref: (4800, 128) bf16 | b_ref: (1, 128) f32
    x = x_ref[...]
    if x.dtype != jnp.bfloat16:          # no cast if the producer already gave bf16
        x = x.astype(jnp.bfloat16)
    logits = jnp.dot(x, w_ref[...], preferred_element_type=jnp.float32)  # f32 accum
    logits = logits + b_ref[...]                                         # pad lanes ~ -1e30

    # log_softmax over the padded class dim; padded lanes contribute exp(.) == 0.
    m = jnp.max(logits, axis=-1, keepdims=True)
    shifted = logits - m
    lse = jnp.log(jnp.sum(jnp.exp(shifted), axis=-1, keepdims=True))
    o_ref[...] = (shifted - lse).astype(o_ref.dtype)


def _pick_batch_tile(B):
    """Pick tb so there are >= 2 near-equal, sublane-aligned tiles whenever B
    allows (megacore sharding on v7x) and the tile fits comfortably in VMEM."""
    tb_max = 512                                   # safe for v7x's 64 MiB / TensorCore
    try:
        info = pltpu.get_tpu_info()
        if getattr(info, "vmem_capacity_bytes", 0) >= 100 * 1024 * 1024:
            tb_max = 1024                          # v5e / v6e: amortize per-step overhead
    except Exception:
        pass
    if B <= 8:
        return B                                   # single full-array block (sublane rule)
    n_tiles = max(2, pl.cdiv(B, tb_max))           # force >= 2 balanced tiles
    return min(tb_max, _round_up(pl.cdiv(B, n_tiles), 8))


def _vmem_limit_bytes(tb, x_itemsize):
    x_buf = 2 * tb * IN_FEATURES * x_itemsize      # double-buffered x tile
    o_buf = 2 * tb * PADDED_CLASSES * 4            # double-buffered output tile
    w_buf = IN_FEATURES * PADDED_CLASSES * 2       # resident bf16 W, single buffer
    b_buf = PADDED_CLASSES * 4
    total = x_buf + o_buf + w_buf + b_buf
    return int(total * 1.3) + (2 << 20)            # ~30% + 2 MiB Mosaic scratch headroom


def one_layer_forward(x, kparams, *, return_padded=False):
    """x: (B, 3, 40, 40) or pre-flattened (B, 4800), f32 or bf16.
    kparams: padded/bf16 params from prepare_params()."""
    B = x.shape[0]
    # TODO(synk): if the upstream producer can emit the flat (B, 4800) layout
    # (ideally bf16) directly, pass it through — this reshape may otherwise
    # materialize a relayout copy that triples the dominant x HBM traffic.
    x_flat = x.reshape(B, -1)                      # == torch .view(x.size(0), -1)
    assert x_flat.shape[1] == IN_FEATURES
    w, b = kparams["w"], kparams["b"]

    tb = _pick_batch_tile(B)
    grid = (pl.cdiv(B, tb),)
    x_itemsize = jnp.dtype(x_flat.dtype).itemsize

    out_padded = pl.pallas_call(
        _one_layer_kernel,
        out_shape=jax.ShapeDtypeStruct((B, PADDED_CLASSES), jnp.float32),
        grid_spec=pltpu.PrefetchScalarGridSpec(
            num_scalar_prefetch=0,
            grid=grid,
            in_specs=[
                pl.BlockSpec((tb, IN_FEATURES), lambda i: (i, 0)),      # x: tiled over B
                pl.BlockSpec((IN_FEATURES, PADDED_CLASSES), lambda i: (0, 0),
                             pipeline_mode=pl.Buffered(1)),             # W: resident, 1 buffer
                pl.BlockSpec((1, PADDED_CLASSES), lambda i: (0, 0),
                             pipeline_mode=pl.Buffered(1)),             # b: resident, 1 buffer
            ],
            out_specs=pl.BlockSpec((tb, PADDED_CLASSES), lambda i: (i, 0)),
        ),
        compiler_params=pltpu.CompilerParams(
            dimension_semantics=("parallel",),             # megacore sharding of batch axis
            vmem_limit_bytes=_vmem_limit_bytes(tb, x_itemsize),
        ),
        cost_estimate=pl.CostEstimate(
            flops=2 * B * IN_FEATURES * PADDED_CLASSES,
            transcendentals=B * PADDED_CLASSES,
            bytes_accessed=(x_flat.size * x_itemsize + w.size * 2 + b.size * 4
                            + B * PADDED_CLASSES * 4),
        ),
    )(x_flat, w, b)

    if return_padded:
        return out_padded          # consumers indexing classes 0..9 can skip the slice copy
    return out_padded[:, :NUM_CLASSES]


def init_params(key):
    """nn.Linear-style uniform(-1/sqrt(fan_in), 1/sqrt(fan_in)) init, (in, out) layout."""
    kw, kb = jax.random.split(key)
    bound = 1.0 / jnp.sqrt(jnp.float32(IN_FEATURES))
    w = jax.random.uniform(kw, (IN_FEATURES, NUM_CLASSES), jnp.float32, -bound, bound)
    b = jax.random.uniform(kb, (1, NUM_CLASSES), jnp.float32, -bound, bound)
    return {"w": w, "b": b}


def prepare_params(params):
    """Pad classes to a lane-dense 128 and cast W to bf16 (bias stays f32 so the
    NEG_PAD sentinel is representable)."""
    w = jnp.zeros((IN_FEATURES, PADDED_CLASSES), jnp.float32)
    w = w.at[:, :NUM_CLASSES].set(params["w"])
    b = jnp.full((1, PADDED_CLASSES), NEG_PAD, jnp.float32)
    b = b.at[:, :NUM_CLASSES].set(params["b"])
    return {"w": w.astype(jnp.bfloat16), "b": b}


def _reference_forward(x, params):
    B = x.shape[0]
    logits = x.reshape(B, -1) @ params["w"] + params["b"]
    return jax.nn.log_softmax(logits, axis=1)


if __name__ == "__main__":
    key = jax.random.PRNGKey(0)
    k_x, k_p = jax.random.split(key)

    batch = 2
    x = jax.random.normal(k_x, (batch, 3, 40, 40), dtype=jnp.float32)

    params = init_params(k_p)
    kparams = prepare_params(params)

    out = one_layer_forward(x, kparams)
    out = jax.block_until_ready(out)

    ref = _reference_forward(x, params)
    assert out.shape == (batch, NUM_CLASSES)
    # bf16 matmul with f32 accumulation over K=4800: logits differ from the f32
    # reference by ~1e-3, well inside the 2e-2 tolerance.
    assert jnp.allclose(out, ref, atol=2e-2, rtol=2e-2), float(jnp.max(jnp.abs(out - ref)))

    print("KERNEL_OK")
</pallas_src>

<mosaic_0001>
module attributes {stable_mosaic.version = 11 : i64} {
  func.func @_one_layer_kernel(%arg0: i32, %arg1: memref<2x4800xf32, #tpu.memory_space<vmem>>, %arg2: memref<4800x128xbf16, #tpu.memory_space<vmem>>, %arg3: memref<1x128xf32, #tpu.memory_space<vmem>>, %arg4: memref<2x128xf32, #tpu.memory_space<vmem>>) attributes {dimension_semantics = [#tpu.dimension_semantics<parallel>], iteration_bounds = array<i64: 1>, scalar_prefetch = 0 : i64, scratch_operands = 0 : i64, tpu.core_type = #tpu.core_type<tc>, window_params = [{transform_indices = @transform_0, window_bounds = array<i64: 2, 4800>}, {pipeline_mode = #tpu.pipeline_mode<synchronous>, transform_indices = @transform_1, window_bounds = array<i64: 4800, 128>}, {pipeline_mode = #tpu.pipeline_mode<synchronous>, transform_indices = @transform_2, window_bounds = array<i64: 1, 128>}, {transform_indices = @transform_3, window_bounds = array<i64: 2, 128>}]} {
    %c0 = arith.constant 0 : index
    %c0_0 = arith.constant 0 : index
    %0 = vector.load %arg1[%c0, %c0_0] : memref<2x4800xf32, #tpu.memory_space<vmem>>, vector<2x4800xf32>
    %1 = arith.truncf %0 : vector<2x4800xf32> to vector<2x4800xbf16>
    %c0_1 = arith.constant 0 : index
    %c0_2 = arith.constant 0 : index
    %2 = vector.load %arg2[%c0_1, %c0_2] : memref<4800x128xbf16, #tpu.memory_space<vmem>>, vector<4800x128xbf16>
    %cst = arith.constant dense<0.000000e+00> : vector<2x128xf32>
    %3 = tpu.matmul %1, %2, %cst {dimension_numbers = #tpu.dot_dimension_numbers<[1], [0], [0], [1], [0, 0, 1, 1], [], []>} : vector<2x4800xbf16>, vector<4800x128xbf16>, vector<2x128xf32> -> vector<2x128xf32>
    %c0_3 = arith.constant 0 : index
    %c0_4 = arith.constant 0 : index
    %4 = vector.load %arg3[%c0_3, %c0_4] : memref<1x128xf32, #tpu.memory_space<vmem>>, vector<1x128xf32>
    %5 = vector.broadcast %4 : vector<1x128xf32> to vector<2x128xf32>
    %6 = arith.addf %3, %5 : vector<2x128xf32>
    %cst_5 = arith.constant dense<0xFF800000> : vector<2xf32>
    %7 = vector.multi_reduction <maximumf>, %6, %cst_5 [1] : vector<2x128xf32> to vector<2xf32>
    %8 = vector.shape_cast %7 : vector<2xf32> to vector<2x1xf32>
    %9 = vector.broadcast %8 : vector<2x1xf32> to vector<2x128xf32>
    %10 = arith.subf %6, %9 : vector<2x128xf32>
    %11 = math.exp %10 : vector<2x128xf32>
    %cst_6 = arith.constant dense<0.000000e+00> : vector<2xf32>
    %12 = vector.multi_reduction <add>, %11, %cst_6 [1] : vector<2x128xf32> to vector<2xf32>
    %13 = vector.shape_cast %12 : vector<2xf32> to vector<2x1xf32>
    %14 = math.log %13 : vector<2x1xf32>
    %15 = vector.broadcast %14 : vector<2x1xf32> to vector<2x128xf32>
    %16 = arith.subf %10, %15 : vector<2x128xf32>
    %c0_7 = arith.constant 0 : index
    %c0_8 = arith.constant 0 : index
    %17 = vector.load %arg4[%c0_7, %c0_8] : memref<2x128xf32, #tpu.memory_space<vmem>>, vector<2x128xf32>
    tpu.vector_store %arg4[%c0_7, %c0_8], %16 {strides = array<i32>} : memref<2x128xf32, #tpu.memory_space<vmem>>, vector<2x128xf32>,
    return
  }
  func.func @transform_0(%arg0: i32) -> (i32, i32) {
    %c0_i32 = arith.constant 0 : i32
    %c0_i32_0 = arith.constant 0 : i32
    return %arg0, %c0_i32 : i32, i32
  }
  func.func @transform_1(%arg0: i32) -> (i32, i32) {
    %c0_i32 = arith.constant 0 : i32
    %c0_i32_0 = arith.constant 0 : i32
    %c0_i32_1 = arith.constant 0 : i32
    return %c0_i32, %c0_i32_0 : i32, i32
  }
  func.func @transform_2(%arg0: i32) -> (i32, i32) {
    %c0_i32 = arith.constant 0 : i32
    %c0_i32_0 = arith.constant 0 : i32
    %c0_i32_1 = arith.constant 0 : i32
    return %c0_i32, %c0_i32_0 : i32, i32
  }
  func.func @transform_3(%arg0: i32) -> (i32, i32) {
    %c0_i32 = arith.constant 0 : i32
    %c0_i32_0 = arith.constant 0 : i32
    return %arg0, %c0_i32 : i32, i32
  }
}

</mosaic_0001>

<llo_original>
// kernel: tpu_custom_call.1
$region0: #{tpu_custom_call.1}
  #allocation0 [shape = 'u32[]', space=smem, size = 0x4, offset = 0x4, fixed_abs, tag = 'smem constant byte address 0x4 - core index']
  #allocation1 [shape = 'u32[144,128]{1,0:T(1,128)}', space=vmem, size = 0x12000, scoped, tag = 'internal scratch']
  %s0 = inlined_call_operand.hbm [shape: f32[2,4800], index: 0, kind: input, shape index: {}]
  %s1 = inlined_call_operand.hbm [shape: bf16[4800,128], index: 1, kind: input, shape index: {}]
  %s2 = inlined_call_operand.hbm [shape: f32[1,128], index: 2, kind: input, shape index: {}]
  %s3 = inlined_call_operand.hbm [shape: f32[2,128], index: 3, kind: output, shape index: {}]
  %s4 = sld [smem:[#allocation0]]
  $region34: #{tpu_custom_call.1} parent=0
    _
  %s6 = ssub.s32 1, %s4
  %s7 = scalar_select 0, %s6, %s4
  $region1: #{tpu_custom_call.1} parent=0
    #allocation2 [shape = 'u8[38912]{0}', space=vmem, size = 0x9800, scoped, tag = 'input window, operand 0, single buffered']
    #allocation3 [shape = 's32[1]{0}', space=sflag, size = 0x4, scoped, tag = 'scoped memory for tpu_custom_call.1']
    #allocation4 [shape = 's32[1]{0}', space=sflag, size = 0x4, scoped, tag = 'scoped memory for tpu_custom_call.1']
    #allocation5 [shape = 'u8[1228800]{0}', space=vmem, size = 0x12c000, scoped, tag = 'input window, operand 1, single buffered']
    #allocation6 [shape = 's32[1]{0}', space=sflag, size = 0x4, scoped, tag = 'scoped memory for tpu_custom_call.1']
    #allocation7 [shape = 'u8[512]{0}', space=vmem, size = 0x400, scoped, tag = 'input window, operand 2, single buffered']
    #allocation8 [shape = 'u8[1024]{0}', space=vmem, size = 0x400, scoped, tag = 'output window, operand 0, single buffered']
    %8 = vsyncpa [#allocation3], 0
    %9 = vsyncpa [#allocation6], 0
    %10 = vsyncpa [#allocation4], 0
    // Predicated region
    $region2: #{tpu_custom_call.1} parent=1 // pred_check
      _
    $region3: #{tpu_custom_call.1} parent=1 // pred_check_branch
      %12 = sbr.rel (0) target = $region5
    $region4: #{tpu_custom_call.1} parent=1 // pred_region
      %s14 = ssub.s32 1216, 1216
      %15 = vsyncadd [#allocation3], %s14
      %s17 = sshll.u32 [#allocation2], 4
      %s18 = int_to_ptr.vmem [resolvable:$true] %s17
      %20 = dma.hbm_to_vmem [thread:$0]  %s0, 1216, %s18, [#allocation3]
    $region5: #{tpu_custom_call.1} parent=1 // pred_fallthru
      _
    // Predicated region
    $region6: #{tpu_custom_call.1} parent=1 // pred_check
      _
    $region7: #{tpu_custom_call.1} parent=1 // pred_check_branch
      %22 = sbr.rel (0) target = $region9
    $region8: #{tpu_custom_call.1} parent=1 // pred_region
      %s24 = ssub.s32 38400, 38400
      %25 = vsyncadd [#allocation6], %s24
      %s26 = sshll.u32 [#allocation5], 4
      %s27 = int_to_ptr.vmem [resolvable:$true] %s26
      %32 = dma.hbm_to_vmem [thread:$0]  %s1, 38400, %s27, [#allocation6], 64, 64, 4
    $region9: #{tpu_custom_call.1} parent=1 // pred_fallthru
      _
    // Predicated region
    $region10: #{tpu_custom_call.1} parent=1 // pred_check
      _
    $region11: #{tpu_custom_call.1} parent=1 // pred_check_branch
      %34 = sbr.rel (0) target = $region13
    $region12: #{tpu_custom_call.1} parent=1 // pred_region
      %s36 = ssub.s32 16, 16
      %37 = vsyncadd [#allocation6], %s36
      %s39 = sshll.u32 [#allocation7], 4
      %s40 = int_to_ptr.vmem [resolvable:$true] %s39
      %42 = dma.hbm_to_vmem [thread:$0]  %s2, 16, %s40, [#allocation6]
    $region13: #{tpu_custom_call.1} parent=1 // pred_fallthru
      _
    // Predicated region
    $region14: #{tpu_custom_call.1} parent=1 // pred_check
      _
    $region15: #{tpu_custom_call.1} parent=1 // pred_check_branch
      %44 = sbr.rel (0) target = $region17
    $region16: #{tpu_custom_call.1} parent=1 // pred_region
      %45 = dma.done [#allocation3], 1216
    $region17: #{tpu_custom_call.1} parent=1 // pred_fallthru
      _
    // Predicated region
    $region18: #{tpu_custom_call.1} parent=1 // pred_check
      _
    $region19: #{tpu_custom_call.1} parent=1 // pred_check_branch
      %47 = sbr.rel (0) target = $region21
    $region20: #{tpu_custom_call.1} parent=1 // pred_region
      %48 = dma.done [#allocation6], 38400
    $region21: #{tpu_custom_call.1} parent=1 // pred_fallthru
      _
    // Predicated region
    $region22: #{tpu_custom_call.1} parent=1 // pred_check
      _
    $region23: #{tpu_custom_call.1} parent=1 // pred_check_branch
      %50 = sbr.rel (0) target = $region25
    $region24: #{tpu_custom_call.1} parent=1 // pred_region
      %51 = dma.done [#allocation6], 16
    $region25: #{tpu_custom_call.1} parent=1 // pred_fallthru
      _
    %v53 = vld [vmem:[#allocation2] sm:$0xff]
    %v54 = vld [vmem:[#allocation2 + $0x8] sm:$0xff]
    %v55 = vld [vmem:[#allocation2 + $0x10] sm:$0xff]
    %v56 = vld [vmem:[#allocation2 + $0x18] sm:$0xff]
    %v57 = vld [vmem:[#allocation2 + $0x20] sm:$0xff]
    %v58 = vld [vmem:[#allocation2 + $0x28] sm:$0xff]
    %v59 = vld [vmem:[#allocation2 + $0x30] sm:$0xff]
    %v60 = vld [vmem:[#allocation2 + $0x38] sm:$0xff]
    %v61 = vld [vmem:[#allocation2 + $0x40] sm:$0xff]
    %v62 = vld [vmem:[#allocation2 + $0x48] sm:$0xf]
    %v73 = vcombine.high %v53, %v53
    %v75 = vunpack.c.l.s4 1983009808
    %v76 = vunpack.c.0.s8 %v75
    %v77 = vlaneseq
    %v78 = vshrl.u32 %v77, 7
    %v79 = vsub.s32 %v76, %v78
    %v80 = vrot.slane %v53, %v79
    %v82 = vunpack.c.l.s4 1983009808
    %v83 = vunpack.c.0.s8 %v82
    %v84 = vlaneseq
    %v85 = vshrl.u32 %v84, 7
    %v86 = vsub.s32 %v83, %v85
    %v87 = vrot.slane %v73, %v86
    %v88 = vcombine.high %v80, %v80
    %v89 = vcombine.high %v87, %v87
    %v90 = vcombine.high %v54, %v54
    %v92 = vunpack.c.l.s4 1983009808
    %v93 = vunpack.c.0.s8 %v92
    %v94 = vlaneseq
    %v95 = vshrl.u32 %v94, 7
    %v96 = vsub.s32 %v93, %v95
    %v97 = vrot.slane %v54, %v96
    %v99 = vunpack.c.l.s4 1983009808
    %v100 = vunpack.c.0.s8 %v99
    %v101 = vlaneseq
    %v102 = vshrl.u32 %v101, 7
    %v103 = vsub.s32 %v100, %v102
    %v104 = vrot.slane %v90, %v103
    %v105 = vcombine.high %v97, %v97
    %v106 = vcombine.high %v104, %v104
    %v107 = vcombine.high %v55, %v55
    %v109 = vunpack.c.l.s4 1983009808
    %v110 = vunpack.c.0.s8 %v109
    %v111 = vlaneseq
    %v112 = vshrl.u32 %v111, 7
    %v113 = vsub.s32 %v110, %v112
    %v114 = vrot.slane %v55, %v113
    %v116 = vunpack.c.l.s4 1983009808
    %v117 = vunpack.c.0.s8 %v116
    %v118 = vlaneseq
    %v119 = vshrl.u32 %v118, 7
    %v120 = vsub.s32 %v117, %v119
    %v121 = vrot.slane %v107, %v120
    %v122 = vcombine.high %v114, %v114
    %v123 = vcombine.high %v121, %v121
    %v124 = vcombine.high %v56, %v56
    %v126 = vunpack.c.l.s4 1983009808
    %v127 = vunpack.c.0.s8 %v126
    %v128 = vlaneseq
    %v129 = vshrl.u32 %v128, 7
    %v130 = vsub.s32 %v127, %v129
    %v131 = vrot.slane %v56, %v130
    %v133 = vunpack.c.l.s4 1983009808
    %v134 = vunpack.c.0.s8 %v133
    %v135 = vlaneseq
    %v136 = vshrl.u32 %v135, 7
    %v137 = vsub.s32 %v134, %v136
    %v138 = vrot.slane %v124, %v137
    %v139 = vcombine.high %v131, %v131
    %v140 = vcombine.high %v138, %v138
    %v141 = vcombine.high %v57, %v57
    %v143 = vunpack.c.l.s4 1983009808
    %v144 = vunpack.c.0.s8 %v143
    %v145 = vlaneseq
    %v146 = vshrl.u32 %v145, 7
    %v147 = vsub.s32 %v144, %v146
    %v148 = vrot.slane %v57, %v147
    %v150 = vunpack.c.l.s4 1983009808
    %v151 = vunpack.c.0.s8 %v150
    %v152 = vlaneseq
    %v153 = vshrl.u32 %v152, 7
    %v154 = vsub.s32 %v151, %v153
    %v155 = vrot.slane %v141, %v154
    %v156 = vcombine.high %v148, %v148
    %v157 = vcombine.high %v155, %v155
    %v158 = vcombine.high %v58, %v58
    %v160 = vunpack.c.l.s4 1983009808
    %v161 = vunpack.c.0.s8 %v160
    %v162 = vlaneseq
    %v163 = vshrl.u32 %v162, 7
    %v164 = vsub.s32 %v161, %v163
    %v165 = vrot.slane %v58, %v164
    %v167 = vunpack.c.l.s4 1983009808
    %v168 = vunpack.c.0.s8 %v167
    %v169 = vlaneseq
    %v170 = vshrl.u32 %v169, 7
    %v171 = vsub.s32 %v168, %v170
    %v172 = vrot.slane %v158, %v171
    %v173 = vcombine.high %v165, %v165
    %v174 = vcombine.high %v172, %v172
    %v175 = vcombine.high %v59, %v59
    %v177 = vunpack.c.l.s4 1983009808
    %v178 = vunpack.c.0.s8 %v177
    %v179 = vlaneseq
    %v180 = vshrl.u32 %v179, 7
    %v181 = vsub.s32 %v178, %v180
    %v182 = vrot.slane %v59, %v181
    %v184 = vunpack.c.l.s4 1983009808
    %v185 = vunpack.c.0.s8 %v184
    %v186 = vlaneseq
    %v187 = vshrl.u32 %v186, 7
    %v188 = vsub.s32 %v185, %v187
    %v189 = vrot.slane %v175, %v188
    %v190 = vcombine.high %v182, %v182
    %v191 = vcombine.high %v189, %v189
    %v192 = vcombine.high %v60, %v60
    %v194 = vunpack.c.l.s4 1983009808
    %v195 = vunpack.c.0.s8 %v194
    %v196 = vlaneseq
    %v197 = vshrl.u32 %v196, 7
    %v198 = vsub.s32 %v195, %v197
    %v199 = vrot.slane %v60, %v198
    %v201 = vunpack.c.l.s4 1983009808
    %v202 = vunpack.c.0.s8 %v201
    %v203 = vlaneseq
    %v204 = vshrl.u32 %v203, 7
    %v205 = vsub.s32 %v202, %v204
    %v206 = vrot.slane %v192, %v205
    %v207 = vcombine.high %v199, %v199
    %v208 = vcombine.high %v206, %v206
    %v209 = vcombine.high %v61, %v61
    %v211 = vunpack.c.l.s4 1983009808
    %v212 = vunpack.c.0.s8 %v211
    %v213 = vlaneseq
    %v214 = vshrl.u32 %v213, 7
    %v215 = vsub.s32 %v212, %v214
    %v216 = vrot.slane %v61, %v215
    %v218 = vunpack.c.l.s4 1983009808
    %v219 = vunpack.c.0.s8 %v218
    %v220 = vlaneseq
    %v221 = vshrl.u32 %v220, 7
    %v222 = vsub.s32 %v219, %v221
    %v223 = vrot.slane %v209, %v222
    %v224 = vcombine.high %v216, %v216
    %v225 = vcombine.high %v223, %v223
    %v227 = vunpack.c.l.s4 1983009808
    %v228 = vunpack.c.0.s8 %v227
    %v229 = vlaneseq
    %v230 = vshrl.u32 %v229, 7
    %v231 = vsub.s32 %v228, %v230
    %v232 = vrot.slane %v62, %v231
    %v233 = vcombine.high %v232, %v232
    %v272 = vpack.c.bf16 %v80, %v80
    %v273 = vpack.c.bf16 %v88, %v88
    %v274 = vpack.c.bf16 %v87, %v87
    %v275 = vpack.c.bf16 %v89, %v89
    %v276 = vpack.c.bf16 %v97, %v97
    %v277 = vpack.c.bf16 %v105, %v105
    %v278 = vpack.c.bf16 %v104, %v104
    %v279 = vpack.c.bf16 %v106, %v106
    %v280 = vpack.c.bf16 %v114, %v114
    %v281 = vpack.c.bf16 %v122, %v122
    %v282 = vpack.c.bf16 %v121, %v121
    %v283 = vpack.c.bf16 %v123, %v123
    %v284 = vpack.c.bf16 %v131, %v131
    %v285 = vpack.c.bf16 %v139, %v139
    %v286 = vpack.c.bf16 %v138, %v138
    %v287 = vpack.c.bf16 %v140, %v140
    %v288 = vpack.c.bf16 %v148, %v148
    %v289 = vpack.c.bf16 %v156, %v156
    %v290 = vpack.c.bf16 %v155, %v155
    %v291 = vpack.c.bf16 %v157, %v157
    %v292 = vpack.c.bf16 %v165, %v165
    %v293 = vpack.c.bf16 %v173, %v173
    %v294 = vpack.c.bf16 %v172, %v172
    %v295 = vpack.c.bf16 %v174, %v174
    %v296 = vpack.c.bf16 %v182, %v182
    %v297 = vpack.c.bf16 %v190, %v190
    %v298 = vpack.c.bf16 %v189, %v189
    %v299 = vpack.c.bf16 %v191, %v191
    %v300 = vpack.c.bf16 %v199, %v199
    %v301 = vpack.c.bf16 %v207, %v207
    %v302 = vpack.c.bf16 %v206, %v206
    %v303 = vpack.c.bf16 %v208, %v208
    %v304 = vpack.c.bf16 %v216, %v216
    %v305 = vpack.c.bf16 %v224, %v224
    %v306 = vpack.c.bf16 %v223, %v223
    %v307 = vpack.c.bf16 %v225, %v225
    %v308 = vpack.c.bf16 %v232, %v232
    %v309 = vpack.c.bf16 %v233, %v233
    %v310 = vld [vmem:[#allocation5] sm:$0xf]
    %v311 = vld [vmem:[#allocation5 + $0x4] sm:$0xf]
    %v312 = vld [vmem:[#allocation5 + $0x8] sm:$0xf]
    %v313 = vld [vmem:[#allocation5 + $0xc] sm:$0xf]
    %v314 = vld [vmem:[#allocation5 + $0x10] sm:$0xf]
    %v315 = vld [vmem:[#allocation5 + $0x14] sm:$0xf]
    %v316 = vld [vmem:[#allocation5 + $0x18] sm:$0xf]
    %v317 = vld [vmem:[#allocation5 + $0x1c] sm:$0xf]
    %v318 = vld [vmem:[#allocation5 + $0x20] sm:$0xf]
    %v319 = vld [vmem:[#allocation5 + $0x24] sm:$0xf]
    %v320 = vld [vmem:[#allocation5 + $0x28] sm:$0xf]
    %v321 = vld [vmem:[#allocation5 + $0x2c] sm:$0xf]
    %v322 = vld [vmem:[#allocation5 + $0x30] sm:$0xf]
    %v323 = vld [vmem:[#allocation5 + $0x34] sm:$0xf]
    %v324 = vld [vmem:[#allocation5 + $0x38] sm:$0xf]
    %v325 = vld [vmem:[#allocation5 + $0x3c] sm:$0xf]
    %v326 = vld [vmem:[#allocation5 + $0x40] sm:$0xf]
    %v327 = vld [vmem:[#allocation5 + $0x44] sm:$0xf]
    %v328 = vld [vmem:[#allocation5 + $0x48] sm:$0xf]
    %v329 = vld [vmem:[#allocation5 + $0x4c] sm:$0xf]
    %v330 = vld [vmem:[#allocation5 + $0x50] sm:$0xf]
    %v331 = vld [vmem:[#allocation5 + $0x54] sm:$0xf]
    %v332 = vld [vmem:[#allocation5 + $0x58] sm:$0xf]
    %v333 = vld [vmem:[#allocation5 + $0x5c] sm:$0xf]
    %v334 = vld [vmem:[#allocation5 + $0x60] sm:$0xf]
    %v335 = vld [vmem:[#allocation5 + $0x64] sm:$0xf]
    %v336 = vld [vmem:[#allocation5 + $0x68] sm:$0xf]
    %v337 = vld [vmem:[#allocation5 + $0x6c] sm:$0xf]
    %v338 = vld [vmem:[#allocation5 + $0x70] sm:$0xf]
    %v339 = vld [vmem:[#allocation5 + $0x74] sm:$0xf]
    %v340 = vld [vmem:[#allocation5 + $0x78] sm:$0xf]
    %v341 = vld [vmem:[#allocation5 + $0x7c] sm:$0xf]
    %v342 = vld [vmem:[#allocation5 + $0x80] sm:$0xf]
    %v343 = vld [vmem:[#allocation5 + $0x84] sm:$0xf]
    %v344 = vld [vmem:[#allocation5 + $0x88] sm:$0xf]
    %v345 = vld [vmem:[#allocation5 + $0x8c] sm:$0xf]
    %v346 = vld [vmem:[#allocation5 + $0x90] sm:$0xf]
    %v347 = vld [vmem:[#allocation5 + $0x94] sm:$0xf]
    %v348 = vld [vmem:[#allocation5 + $0x98] sm:$0xf]
    %v349 = vld [vmem:[#allocation5 + $0x9c] sm:$0xf]
    %v350 = vld [vmem:[#allocation5 + $0xa0] sm:$0xf]
    %v351 = vld [vmem:[#allocation5 + $0xa4] sm:$0xf]
    %v352 = vld [vmem:[#allocation5 + $0xa8] sm:$0xf]
    %v353 = vld [vmem:[#allocation5 + $0xac] sm:$0xf]
    %v354 = vld [vmem:[#allocation5 + $0xb0] sm:$0xf]
    %v355 = vld [vmem:[#allocation5 + $0xb4] sm:$0xf]
    %v356 = vld [vmem:[#allocation5 + $0xb8] sm:$0xf]
    %v357 = vld [vmem:[#allocation5 + $0xbc] sm:$0xf]
    %v358 = vld [vmem:[#allocation5 + $0xc0] sm:$0xf]
    %v359 = vld [vmem:[#allocation5 + $0xc4] sm:$0xf]
    %v360 = vld [vmem:[#allocation5 + $0xc8] sm:$0xf]
    %v361 = vld [vmem:[#allocation5 + $0xcc] sm:$0xf]
    %v362 = vld [vmem:[#allocation5 + $0xd0] sm:$0xf]
    %v363 = vld [vmem:[#allocation5 + $0xd4] sm:$0xf]
    %v364 = vld [vmem:[#allocation5 + $0xd8] sm:$0xf]
    %v365 = vld [vmem:[#allocation5 + $0xdc] sm:$0xf]
    %v366 = vld [vmem:[#allocation5 + $0xe0] sm:$0xf]
    %v367 = vld [vmem:[#allocation5 + $0xe4] sm:$0xf]
    %v368 = vld [vmem:[#allocation5 + $0xe8] sm:$0xf]
    %v369 = vld [vmem:[#allocation5 + $0xec] sm:$0xf]
    %v370 = vld [vmem:[#allocation5 + $0xf0] sm:$0xf]
    %v371 = vld [vmem:[#allocation5 + $0xf4] sm:$0xf]
    %v372 = vld [vmem:[#allocation5 + $0xf8] sm:$0xf]
    %v373 = vld [vmem:[#allocation5 + $0xfc] sm:$0xf]
    %v374 = vld [vmem:[#allocation5 + $0x100] sm:$0xf]
    %v375 = vld [vmem:[#allocation5 + $0x104] sm:$0xf]
    %v376 = vld [vmem:[#allocation5 + $0x108] sm:$0xf]
    %v377 = vld [vmem:[#allocation5 + $0x10c] sm:$0xf]
    %v378 = vld [vmem:[#allocation5 + $0x110] sm:$0xf]
    %v379 = vld [vmem:[#allocation5 + $0x114] sm:$0xf]
    %v380 = vld [vmem:[#allocation5 + $0x118] sm:$0xf]
    %v381 = vld [vmem:[#allocation5 + $0x11c] sm:$0xf]
    %v382 = vld [vmem:[#allocation5 + $0x120] sm:$0xf]
    %v383 = vld [vmem:[#allocation5 + $0x124] sm:$0xf]
    %v384 = vld [vmem:[#allocation5 + $0x128] sm:$0xf]
    %v385 = vld [vmem:[#allocation5 + $0x12c] sm:$0xf]
    %v386 = vld [vmem:[#allocation5 + $0x130] sm:$0xf]
    %v387 = vld [vmem:[#allocation5 + $0x134] sm:$0xf]
    %v388 = vld [vmem:[#allocation5 + $0x138] sm:$0xf]
    %v389 = vld [vmem:[#allocation5 + $0x13c] sm:$0xf]
    %v390 = vld [vmem:[#allocation5 + $0x140] sm:$0xf]
    %v391 = vld [vmem:[#allocation5 + $0x144] sm:$0xf]
    %v392 = vld [vmem:[#allocation5 + $0x148] sm:$0xf]
    %v393 = vld [vmem:[#allocation5 + $0x14c] sm:$0xf]
    %v394 = vld [vmem:[#allocation5 + $0x150] sm:$0xf]
    %v395 = vld [vmem:[#allocation5 + $0x154] sm:$0xf]
    %v396 = vld [vmem:[#allocation5 + $0x158] sm:$0xf]
    %v397 = vld [vmem:[#allocation5 + $0x15c] sm:$0xf]
    %v398 = vld [vmem:[#allocation5 + $0x160] sm:$0xf]
    %v399 = vld [vmem:[#allocation5 + $0x164] sm:$0xf]
    %v400 = vld [vmem:[#allocation5 + $0x168] sm:$0xf]
    %v401 = vld [vmem:[#allocation5 + $0x16c] sm:$0xf]
    %v402 = vld [vmem:[#allocation5 + $0x170] sm:$0xf]
    %v403 = vld [vmem:[#allocation5 + $0x174] sm:$0xf]
    %v404 = vld [vmem:[#allocation5 + $0x178] sm:$0xf]
    %v405 = vld [vmem:[#allocation5 + $0x17c] sm:$0xf]
    %v406 = vld [vmem:[#allocation5 + $0x180] sm:$0xf]
    %v407 = vld [vmem:[#allocation5 + $0x184] sm:$0xf]
    %v408 = vld [vmem:[#allocation5 + $0x188] sm:$0xf]
    %v409 = vld [vmem:[#allocation5 + $0x18c] sm:$0xf]
    %v410 = vld [vmem:[#allocation5 + $0x190] sm:$0xf]
    %v411 = vld [vmem:[#allocation5 + $0x194] sm:$0xf]
    %v412 = vld [vmem:[#allocation5 + $0x198] sm:$0xf]
    %v413 = vld [vmem:[#allocation5 + $0x19c] sm:$0xf]
    %v414 = vld [vmem:[#allocation5 + $0x1a0] sm:$0xf]
    %v415 = vld [vmem:[#allocation5 + $0x1a4] sm:$0xf]
    %v416 = vld [vmem:[#allocation5 + $0x1a8] sm:$0xf]
    %v417 = vld [vmem:[#allocation5 + $0x1ac] sm:$0xf]
    %v418 = vld [vmem:[#allocation5 + $0x1b0] sm:$0xf]
    %v419 = vld [vmem:[#allocation5 + $0x1b4] sm:$0xf]
    %v420 = vld [vmem:[#allocation5 + $0x1b8] sm:$0xf]
    %v421 = vld [vmem:[#allocation5 + $0x1bc] sm:$0xf]
    %v422 = vld [vmem:[#allocation5 + $0x1c0] sm:$0xf]
    %v423 = vld [vmem:[#allocation5 + $0x1c4] sm:$0xf]
    %v424 = vld [vmem:[#allocation5 + $0x1c8] sm:$0xf]
    %v425 = vld [vmem:[#allocation5 + $0x1cc] sm:$0xf]
    %v426 = vld [vmem:[#allocation5 + $0x1d0] sm:$0xf]
    %v427 = vld [vmem:[#allocation5 + $0x1d4] sm:$0xf]
    %v428 = vld [vmem:[#allocation5 + $0x1d8] sm:$0xf]
    %v429 = vld [vmem:[#allocation5 + $0x1dc] sm:$0xf]
    %v430 = vld [vmem:[#allocation5 + $0x1e0] sm:$0xf]
    %v431 = vld [vmem:[#allocation5 + $0x1e4] sm:$0xf]
    %v432 = vld [vmem:[#allocation5 + $0x1e8] sm:$0xf]
    %v433 = vld [vmem:[#allocation5 + $0x1ec] sm:$0xf]
    %v434 = vld [vmem:[#allocation5 + $0x1f0] sm:$0xf]
    %v435 = vld [vmem:[#allocation5 + $0x1f4] sm:$0xf]
    %v436 = vld [vmem:[#allocation5 + $0x1f8] sm:$0xf]
    %v437 = vld [vmem:[#allocation5 + $0x1fc] sm:$0xf]
    %v438 = vld [vmem:[#allocation5 + $0x200] sm:$0xf]
    %v439 = vld [vmem:[#allocation5 + $0x204] sm:$0xf]
    %v440 = vld [vmem:[#allocation5 + $0x208] sm:$0xf]
    %v441 = vld [vmem:[#allocation5 + $0x20c] sm:$0xf]
    %v442 = vld [vmem:[#allocation5 + $0x210] sm:$0xf]
    %v443 = vld [vmem:[#allocation5 + $0x214] sm:$0xf]
    %v444 = vld [vmem:[#allocation5 + $0x218] sm:$0xf]
    %v445 = vld [vmem:[#allocation5 + $0x21c] sm:$0xf]
    %v446 = vld [vmem:[#allocation5 + $0x220] sm:$0xf]
    %v447 = vld [vmem:[#allocation5 + $0x224] sm:$0xf]
    %v448 = vld [vmem:[#allocation5 + $0x228] sm:$0xf]
    %v449 = vld [vmem:[#allocation5 + $0x22c] sm:$0xf]
    %v450 = vld [vmem:[#allocation5 + $0x230] sm:$0xf]
    %v451 = vld [vmem:[#allocation5 + $0x234] sm:$0xf]
    %v452 = vld [vmem:[#allocation5 + $0x238] sm:$0xf]
    %v453 = vld [vmem:[#allocation5 + $0x23c] sm:$0xf]
    %v454 = vld [vmem:[#allocation5 + $0x240] sm:$0xf]
    %v455 = vld [vmem:[#allocation5 + $0x244] sm:$0xf]
    %v456 = vld [vmem:[#allocation5 + $0x248] sm:$0xf]
    %v457 = vld [vmem:[#allocation5 + $0x24c] sm:$0xf]
    %v458 = vld [vmem:[#allocation5 + $0x250] sm:$0xf]
    %v459 = vld [vmem:[#allocation5 + $0x254] sm:$0xf]
    %v460 = vld [vmem:[#allocation5 + $0x258] sm:$0xf]
    %v461 = vld [vmem:[#allocation5 + $0x25c] sm:$0xf]
    %v462 = vld [vmem:[#allocation5 + $0x260] sm:$0xf]
    %v463 = vld [vmem:[#allocation5 + $0x264] sm:$0xf]
    %v464 = vld [vmem:[#allocation5 + $0x268] sm:$0xf]
    %v465 = vld [vmem:[#allocation5 + $0x26c] sm:$0xf]
    %v466 = vld [vmem:[#allocation5 + $0x270] sm:$0xf]
    %v467 = vld [vmem:[#allocation5 + $0x274] sm:$0xf]
    %v468 = vld [vmem:[#allocation5 + $0x278] sm:$0xf]
    %v469 = vld [vmem:[#allocation5 + $0x27c] sm:$0xf]
    %v470 = vld [vmem:[#allocation5 + $0x280] sm:$0xf]
    %v471 = vld [vmem:[#allocation5 + $0x284] sm:$0xf]
    %v472 = vld [vmem:[#allocation5 + $0x288] sm:$0xf]
    %v473 = vld [vmem:[#allocation5 + $0x28c] sm:$0xf]
    %v474 = vld [vmem:[#allocation5 + $0x290] sm:$0xf]
    %v475 = vld [vmem:[#allocation5 + $0x294] sm:$0xf]
    %v476 = vld [vmem:[#allocation5 + $0x298] sm:$0xf]
    %v477 = vld [vmem:[#allocation5 + $0x29c] sm:$0xf]
    %v478 = vld [vmem:[#allocation5 + $0x2a0] sm:$0xf]
    %v479 = vld [vmem:[#allocation5 + $0x2a4] sm:$0xf]
    %v480 = vld [vmem:[#allocation5 + $0x2a8] sm:$0xf]
    %v481 = vld [vmem:[#allocation5 + $0x2ac] sm:$0xf]
    %v482 = vld [vmem:[#allocation5 + $0x2b0] sm:$0xf]
    %v483 = vld [vmem:[#allocation5 + $0x2b4] sm:$0xf]
    %v484 = vld [vmem:[#allocation5 + $0x2b8] sm:$0xf]
    %v485 = vld [vmem:[#allocation5 + $0x2bc] sm:$0xf]
    %v486 = vld [vmem:[#allocation5 + $0x2c0] sm:$0xf]
    %v487 = vld [vmem:[#allocation5 + $0x2c4] sm:$0xf]
    %v488 = vld [vmem:[#allocation5 + $0x2c8] sm:$0xf]
    %v489 = vld [vmem:[#allocation5 + $0x2cc] sm:$0xf]
    %v490 = vld [vmem:[#allocation5 + $0x2d0] sm:$0xf]
    %v491 = vld [vmem:[#allocation5 + $0x2d4] sm:$0xf]
    %v492 = vld [vmem:[#allocation5 + $0x2d8] sm:$0xf]
    %v493 = vld [vmem:[#allocation5 + $0x2dc] sm:$0xf]
    %v494 = vld [vmem:[#allocation5 + $0x2e0] sm:$0xf]
    %v495 = vld [vmem:[#allocation5 + $0x2e4] sm:$0xf]
    %v496 = vld [vmem:[#allocation5 + $0x2e8] sm:$0xf]
    %v497 = vld [vmem:[#allocation5 + $0x2ec] sm:$0xf]
    %v498 = vld [vmem:[#allocation5 + $0x2f0] sm:$0xf]
    %v499 = vld [vmem:[#allocation5 + $0x2f4] sm:$0xf]
    %v500 = vld [vmem:[#allocation5 + $0x2f8] sm:$0xf]
    %v501 = vld [vmem:[#allocation5 + $0x2fc] sm:$0xf]
    %v502 = vld [vmem:[#allocation5 + $0x300] sm:$0xf]
    %v503 = vld [vmem:[#allocation5 + $0x304] sm:$0xf]
    %v504 = vld [vmem:[#allocation5 + $0x308] sm:$0xf]
    %v505 = vld [vmem:[#allocation5 + $0x30c] sm:$0xf]
    %v506 = vld [vmem:[#allocation5 + $0x310] sm:$0xf]
    %v507 = vld [vmem:[#allocation5 + $0x314] sm:$0xf]
    %v508 = vld [vmem:[#allocation5 + $0x318] sm:$0xf]
    %v509 = vld [vmem:[#allocation5 + $0x31c] sm:$0xf]
    %v510 = vld [vmem:[#allocation5 + $0x320] sm:$0xf]
    %v511 = vld [vmem:[#allocation5 + $0x324] sm:$0xf]
    %v512 = vld [vmem:[#allocation5 + $0x328] sm:$0xf]
    %v513 = vld [vmem:[#allocation5 + $0x32c] sm:$0xf]
    %v514 = vld [vmem:[#allocation5 + $0x330] sm:$0xf]
    %v515 = vld [vmem:[#allocation5 + $0x334] sm:$0xf]
    %v516 = vld [vmem:[#allocation5 + $0x338] sm:$0xf]
    %v517 = vld [vmem:[#allocation5 + $0x33c] sm:$0xf]
    %v518 = vld [vmem:[#allocation5 + $0x340] sm:$0xf]
    %v519 = vld [vmem:[#allocation5 + $0x344] sm:$0xf]
    %v520 = vld [vmem:[#allocation5 + $0x348] sm:$0xf]
    %v521 = vld [vmem:[#allocation5 + $0x34c] sm:$0xf]
    %v522 = vld [vmem:[#allocation5 + $0x350] sm:$0xf]
    %v523 = vld [vmem:[#allocation5 + $0x354] sm:$0xf]
    %v524 = vld [vmem:[#allocation5 + $0x358] sm:$0xf]
    %v525 = vld [vmem:[#allocation5 + $0x35c] sm:$0xf]
    %v526 = vld [vmem:[#allocation5 + $0x360] sm:$0xf]
    %v527 = vld [vmem:[#allocation5 + $0x364] sm:$0xf]
    %v528 = vld [vmem:[#allocation5 + $0x368] sm:$0xf]
    %v529 = vld [vmem:[#allocation5 + $0x36c] sm:$0xf]
    %v530 = vld [vmem:[#allocation5 + $0x370] sm:$0xf]
    %v531 = vld [vmem:[#allocation5 + $0x374] sm:$0xf]
    %v532 = vld [vmem:[#allocation5 + $0x378] sm:$0xf]
    %v533 = vld [vmem:[#allocation5 + $0x37c] sm:$0xf]
    %v534 = vld [vmem:[#allocation5 + $0x380] sm:$0xf]
    %v535 = vld [vmem:[#allocation5 + $0x384] sm:$0xf]
    %v536 = vld [vmem:[#allocation5 + $0x388] sm:$0xf]
    %v537 = vld [vmem:[#allocation5 + $0x38c] sm:$0xf]
    %v538 = vld [vmem:[#allocation5 + $0x390] sm:$0xf]
    %v539 = vld [vmem:[#allocation5 + $0x394] sm:$0xf]
    %v540 = vld [vmem:[#allocation5 + $0x398] sm:$0xf]
    %v541 = vld [vmem:[#allocation5 + $0x39c] sm:$0xf]
    %v542 = vld [vmem:[#allocation5 + $0x3a0] sm:$0xf]
    %v543 = vld [vmem:[#allocation5 + $0x3a4] sm:$0xf]
    %v544 = vld [vmem:[#allocation5 + $0x3a8] sm:$0xf]
    %v545 = vld [vmem:[#allocation5 + $0x3ac] sm:$0xf]
    %v546 = vld [vmem:[#allocation5 + $0x3b0] sm:$0xf]
    %v547 = vld [vmem:[#allocation5 + $0x3b4] sm:$0xf]
    %v548 = vld [vmem:[#allocation5 + $0x3b8] sm:$0xf]
    %v549 = vld [vmem:[#allocation5 + $0x3bc] sm:$0xf]
    %v550 = vld [vmem:[#allocation5 + $0x3c0] sm:$0xf]
    %v551 = vld [vmem:[#allocation5 + $0x3c4] sm:$0xf]
    %v552 = vld [vmem:[#allocation5 + $0x3c8] sm:$0xf]
    %v553 = vld [vmem:[#allocation5 + $0x3cc] sm:$0xf]
    %v554 = vld [vmem:[#allocation5 + $0x3d0] sm:$0xf]
    %v555 = vld [vmem:[#allocation5 + $0x3d4] sm:$0xf]
    %v556 = vld [vmem:[#allocation5 + $0x3d8] sm:$0xf]
    %v557 = vld [vmem:[#allocation5 + $0x3dc] sm:$0xf]
    %v558 = vld [vmem:[#allocation5 + $0x3e0] sm:$0xf]
    %v559 = vld [vmem:[#allocation5 + $0x3e4] sm:$0xf]
    %v560 = vld [vmem:[#allocation5 + $0x3e8] sm:$0xf]
    %v561 = vld [vmem:[#allocation5 + $0x3ec] sm:$0xf]
    %v562 = vld [vmem:[#allocation5 + $0x3f0] sm:$0xf]
    %v563 = vld [vmem:[#allocation5 + $0x3f4] sm:$0xf]
    %v564 = vld [vmem:[#allocation5 + $0x3f8] sm:$0xf]
    %v565 = vld [vmem:[#allocation5 + $0x3fc] sm:$0xf]
    %v566 = vld [vmem:[#allocation5 + $0x400] sm:$0xf]
    %v567 = vld [vmem:[#allocation5 + $0x404] sm:$0xf]
    %v568 = vld [vmem:[#allocation5 + $0x408] sm:$0xf]
    %v569 = vld [vmem:[#allocation5 + $0x40c] sm:$0xf]
    %v570 = vld [vmem:[#allocation5 + $0x410] sm:$0xf]
    %v571 = vld [vmem:[#allocation5 + $0x414] sm:$0xf]
    %v572 = vld [vmem:[#allocation5 + $0x418] sm:$0xf]
    %v573 = vld [vmem:[#allocation5 + $0x41c] sm:$0xf]
    %v574 = vld [vmem:[#allocation5 + $0x420] sm:$0xf]
    %v575 = vld [vmem:[#allocation5 + $0x424] sm:$0xf]
    %v576 = vld [vmem:[#allocation5 + $0x428] sm:$0xf]
    %v577 = vld [vmem:[#allocation5 + $0x42c] sm:$0xf]
    %v578 = vld [vmem:[#allocation5 + $0x430] sm:$0xf]
    %v579 = vld [vmem:[#allocation5 + $0x434] sm:$0xf]
    %v580 = vld [vmem:[#allocation5 + $0x438] sm:$0xf]
    %v581 = vld [vmem:[#allocation5 + $0x43c] sm:$0xf]
    %v582 = vld [vmem:[#allocation5 + $0x440] sm:$0xf]
    %v583 = vld [vmem:[#allocation5 + $0x444] sm:$0xf]
    %v584 = vld [vmem:[#allocation5 + $0x448] sm:$0xf]
    %v585 = vld [vmem:[#allocation5 + $0x44c] sm:$0xf]
    %v586 = vld [vmem:[#allocation5 + $0x450] sm:$0xf]
    %v587 = vld [vmem:[#allocation5 + $0x454] sm:$0xf]
    %v588 = vld [vmem:[#allocation5 + $0x458] sm:$0xf]
    %v589 = vld [vmem:[#allocation5 + $0x45c] sm:$0xf]
    %v590 = vld [vmem:[#allocation5 + $0x460] sm:$0xf]
    %v591 = vld [vmem:[#allocation5 + $0x464] sm:$0xf]
    %v592 = vld [vmem:[#allocation5 + $0x468] sm:$0xf]
    %v593 = vld [vmem:[#allocation5 + $0x46c] sm:$0xf]
    %v594 = vld [vmem:[#allocation5 + $0x470] sm:$0xf]
    %v595 = vld [vmem:[#allocation5 + $0x474] sm:$0xf]
    %v596 = vld [vmem:[#allocation5 + $0x478] sm:$0xf]
    %v597 = vld [vmem:[#allocation5 + $0x47c] sm:$0xf]
    %v598 = vld [vmem:[#allocation5 + $0x480] sm:$0xf]
    %v599 = vld [vmem:[#allocation5 + $0x484] sm:$0xf]
    %v600 = vld [vmem:[#allocation5 + $0x488] sm:$0xf]
    %v601 = vld [vmem:[#allocation5 + $0x48c] sm:$0xf]
    %v602 = vld [vmem:[#allocation5 + $0x490] sm:$0xf]
    %v603 = vld [vmem:[#allocation5 + $0x494] sm:$0xf]
    %v604 = vld [vmem:[#allocation5 + $0x498] sm:$0xf]
    %v605 = vld [vmem:[#allocation5 + $0x49c] sm:$0xf]
    %v606 = vld [vmem:[#allocation5 + $0x4a0] sm:$0xf]
    %v607 = vld [vmem:[#allocation5 + $0x4a4] sm:$0xf]
    %v608 = vld [vmem:[#allocation5 + $0x4a8] sm:$0xf]
    %v609 = vld [vmem:[#allocation5 + $0x4ac] sm:$0xf]
    %v610 = vld [vmem:[#allocation5 + $0x4b0] sm:$0xf]
    %v611 = vld [vmem:[#allocation5 + $0x4b4] sm:$0xf]
    %v612 = vld [vmem:[#allocation5 + $0x4b8] sm:$0xf]
    %v613 = vld [vmem:[#allocation5 + $0x4bc] sm:$0xf]
    %v614 = vld [vmem:[#allocation5 + $0x4c0] sm:$0xf]
    %v615 = vld [vmem:[#allocation5 + $0x4c4] sm:$0xf]
    %v616 = vld [vmem:[#allocation5 + $0x4c8] sm:$0xf]
    %v617 = vld [vmem:[#allocation5 + $0x4cc] sm:$0xf]
    %v618 = vld [vmem:[#allocation5 + $0x4d0] sm:$0xf]
    %v619 = vld [vmem:[#allocation5 + $0x4d4] sm:$0xf]
    %v620 = vld [vmem:[#allocation5 + $0x4d8] sm:$0xf]
    %v621 = vld [vmem:[#allocation5 + $0x4dc] sm:$0xf]
    %v622 = vld [vmem:[#allocation5 + $0x4e0] sm:$0xf]
    %v623 = vld [vmem:[#allocation5 + $0x4e4] sm:$0xf]
    %v624 = vld [vmem:[#allocation5 + $0x4e8] sm:$0xf]
    %v625 = vld [vmem:[#allocation5 + $0x4ec] sm:$0xf]
    %v626 = vld [vmem:[#allocation5 + $0x4f0] sm:$0xf]
    %v627 = vld [vmem:[#allocation5 + $0x4f4] sm:$0xf]
    %v628 = vld [vmem:[#allocation5 + $0x4f8] sm:$0xf]
    %v629 = vld [vmem:[#allocation5 + $0x4fc] sm:$0xf]
    %v630 = vld [vmem:[#allocation5 + $0x500] sm:$0xf]
    %v631 = vld [vmem:[#allocation5 + $0x504] sm:$0xf]
    %v632 = vld [vmem:[#allocation5 + $0x508] sm:$0xf]
    %v633 = vld [vmem:[#allocation5 + $0x50c] sm:$0xf]
    %v634 = vld [vmem:[#allocation5 + $0x510] sm:$0xf]
    %v635 = vld [vmem:[#allocation5 + $0x514] sm:$0xf]
    %v636 = vld [vmem:[#allocation5 + $0x518] sm:$0xf]
    %v637 = vld [vmem:[#allocation5 + $0x51c] sm:$0xf]
    %v638 = vld [vmem:[#allocation5 + $0x520] sm:$0xf]
    %v639 = vld [vmem:[#allocation5 + $0x524] sm:$0xf]
    %v640 = vld [vmem:[#allocation5 + $0x528] sm:$0xf]
    %v641 = vld [vmem:[#allocation5 + $0x52c] sm:$0xf]
    %v642 = vld [vmem:[#allocation5 + $0x530] sm:$0xf]
    %v643 = vld [vmem:[#allocation5 + $0x534] sm:$0xf]
    %v644 = vld [vmem:[#allocation5 + $0x538] sm:$0xf]
    %v645 = vld [vmem:[#allocation5 + $0x53c] sm:$0xf]
    %v646 = vld [vmem:[#allocation5 + $0x540] sm:$0xf]
    %v647 = vld [vmem:[#allocation5 + $0x544] sm:$0xf]
    %v648 = vld [vmem:[#allocation5 + $0x548] sm:$0xf]
    %v649 = vld [vmem:[#allocation5 + $0x54c] sm:$0xf]
    %v650 = vld [vmem:[#allocation5 + $0x550] sm:$0xf]
    %v651 = vld [vmem:[#allocation5 + $0x554] sm:$0xf]
    %v652 = vld [vmem:[#allocation5 + $0x558] sm:$0xf]
    %v653 = vld [vmem:[#allocation5 + $0x55c] sm:$0xf]
    %v654 = vld [vmem:[#allocation5 + $0x560] sm:$0xf]
    %v655 = vld [vmem:[#allocation5 + $0x564] sm:$0xf]
    %v656 = vld [vmem:[#allocation5 + $0x568] sm:$0xf]
    %v657 = vld [vmem:[#allocation5 + $0x56c] sm:$0xf]
    %v658 = vld [vmem:[#allocation5 + $0x570] sm:$0xf]
    %v659 = vld [vmem:[#allocation5 + $0x574] sm:$0xf]
    %v660 = vld [vmem:[#allocation5 + $0x578] sm:$0xf]
    %v661 = vld [vmem:[#allocation5 + $0x57c] sm:$0xf]
    %v662 = vld [vmem:[#allocation5 + $0x580] sm:$0xf]
    %v663 = vld [vmem:[#allocation5 + $0x584] sm:$0xf]
    %v664 = vld [vmem:[#allocation5 + $0x588] sm:$0xf]
    %v665 = vld [vmem:[#allocation5 + $0x58c] sm:$0xf]
    %v666 = vld [vmem:[#allocation5 + $0x590] sm:$0xf]
    %v667 = vld [vmem:[#allocation5 + $0x594] sm:$0xf]
    %v668 = vld [vmem:[#allocation5 + $0x598] sm:$0xf]
    %v669 = vld [vmem:[#allocation5 + $0x59c] sm:$0xf]
    %v670 = vld [vmem:[#allocation5 + $0x5a0] sm:$0xf]
    %v671 = vld [vmem:[#allocation5 + $0x5a4] sm:$0xf]
    %v672 = vld [vmem:[#allocation5 + $0x5a8] sm:$0xf]
    %v673 = vld [vmem:[#allocation5 + $0x5ac] sm:$0xf]
    %v674 = vld [vmem:[#allocation5 + $0x5b0] sm:$0xf]
    %v675 = vld [vmem:[#allocation5 + $0x5b4] sm:$0xf]
    %v676 = vld [vmem:[#allocation5 + $0x5b8] sm:$0xf]
    %v677 = vld [vmem:[#allocation5 + $0x5bc] sm:$0xf]
    %v678 = vld [vmem:[#allocation5 + $0x5c0] sm:$0xf]
    %v679 = vld [vmem:[#allocation5 + $0x5c4] sm:$0xf]
    %v680 = vld [vmem:[#allocation5 + $0x5c8] sm:$0xf]
    %v681 = vld [vmem:[#allocation5 + $0x5cc] sm:$0xf]
    %v682 = vld [vmem:[#allocation5 + $0x5d0] sm:$0xf]
    %v683 = vld [vmem:[#allocation5 + $0x5d4] sm:$0xf]
    %v684 = vld [vmem:[#allocation5 + $0x5d8] sm:$0xf]
    %v685 = vld [vmem:[#allocation5 + $0x5dc] sm:$0xf]
    %v686 = vld [vmem:[#allocation5 + $0x5e0] sm:$0xf]
    %v687 = vld [vmem:[#allocation5 + $0x5e4] sm:$0xf]
    %v688 = vld [vmem:[#allocation5 + $0x5e8] sm:$0xf]
    %v689 = vld [vmem:[#allocation5 + $0x5ec] sm:$0xf]
    %v690 = vld [vmem:[#allocation5 + $0x5f0] sm:$0xf]
    %v691 = vld [vmem:[#allocation5 + $0x5f4] sm:$0xf]
    %v692 = vld [vmem:[#allocation5 + $0x5f8] sm:$0xf]
    %v693 = vld [vmem:[#allocation5 + $0x5fc] sm:$0xf]
    %v694 = vld [vmem:[#allocation5 + $0x600] sm:$0xf]
    %v695 = vld [vmem:[#allocation5 + $0x604] sm:$0xf]
    %v696 = vld [vmem:[#allocation5 + $0x608] sm:$0xf]
    %v697 = vld [vmem:[#allocation5 + $0x60c] sm:$0xf]
    %v698 = vld [vmem:[#allocation5 + $0x610] sm:$0xf]
    %v699 = vld [vmem:[#allocation5 + $0x614] sm:$0xf]
    %v700 = vld [vmem:[#allocation5 + $0x618] sm:$0xf]
    %v701 = vld [vmem:[#allocation5 + $0x61c] sm:$0xf]
    %v702 = vld [vmem:[#allocation5 + $0x620] sm:$0xf]
    %v703 = vld [vmem:[#allocation5 + $0x624] sm:$0xf]
    %v704 = vld [vmem:[#allocation5 + $0x628] sm:$0xf]
    %v705 = vld [vmem:[#allocation5 + $0x62c] sm:$0xf]
    %v706 = vld [vmem:[#allocation5 + $0x630] sm:$0xf]
    %v707 = vld [vmem:[#allocation5 + $0x634] sm:$0xf]
    %v708 = vld [vmem:[#allocation5 + $0x638] sm:$0xf]
    %v709 = vld [vmem:[#allocation5 + $0x63c] sm:$0xf]
    %v710 = vld [vmem:[#allocation5 + $0x640] sm:$0xf]
    %v711 = vld [vmem:[#allocation5 + $0x644] sm:$0xf]
    %v712 = vld [vmem:[#allocation5 + $0x648] sm:$0xf]
    %v713 = vld [vmem:[#allocation5 + $0x64c] sm:$0xf]
    %v714 = vld [vmem:[#allocation5 + $0x650] sm:$0xf]
    %v715 = vld [vmem:[#allocation5 + $0x654] sm:$0xf]
    %v716 = vld [vmem:[#allocation5 + $0x658] sm:$0xf]
    %v717 = vld [vmem:[#allocation5 + $0x65c] sm:$0xf]
    %v718 = vld [vmem:[#allocation5 + $0x660] sm:$0xf]
    %v719 = vld [vmem:[#allocation5 + $0x664] sm:$0xf]
    %v720 = vld [vmem:[#allocation5 + $0x668] sm:$0xf]
    %v721 = vld [vmem:[#allocation5 + $0x66c] sm:$0xf]
    %v722 = vld [vmem:[#allocation5 + $0x670] sm:$0xf]
    %v723 = vld [vmem:[#allocation5 + $0x674] sm:$0xf]
    %v724 = vld [vmem:[#allocation5 + $0x678] sm:$0xf]
    %v725 = vld [vmem:[#allocation5 + $0x67c] sm:$0xf]
    %v726 = vld [vmem:[#allocation5 + $0x680] sm:$0xf]
    %v727 = vld [vmem:[#allocation5 + $0x684] sm:$0xf]
    %v728 = vld [vmem:[#allocation5 + $0x688] sm:$0xf]
    %v729 = vld [vmem:[#allocation5 + $0x68c] sm:$0xf]
    %v730 = vld [vmem:[#allocation5 + $0x690] sm:$0xf]
    %v731 = vld [vmem:[#allocation5 + $0x694] sm:$0xf]
    %v732 = vld [vmem:[#allocation5 + $0x698] sm:$0xf]
    %v733 = vld [vmem:[#allocation5 + $0x69c] sm:$0xf]
    %v734 = vld [vmem:[#allocation5 + $0x6a0] sm:$0xf]
    %v735 = vld [vmem:[#allocation5 + $0x6a4] sm:$0xf]
    %v736 = vld [vmem:[#allocation5 + $0x6a8] sm:$0xf]
    %v737 = vld [vmem:[#allocation5 + $0x6ac] sm:$0xf]
    %v738 = vld [vmem:[#allocation5 + $0x6b0] sm:$0xf]
    %v739 = vld [vmem:[#allocation5 + $0x6b4] sm:$0xf]
    %v740 = vld [vmem:[#allocation5 + $0x6b8] sm:$0xf]
    %v741 = vld [vmem:[#allocation5 + $0x6bc] sm:$0xf]
    %v742 = vld [vmem:[#allocation5 + $0x6c0] sm:$0xf]
    %v743 = vld [vmem:[#allocation5 + $0x6c4] sm:$0xf]
    %v744 = vld [vmem:[#allocation5 + $0x6c8] sm:$0xf]
    %v745 = vld [vmem:[#allocation5 + $0x6cc] sm:$0xf]
    %v746 = vld [vmem:[#allocation5 + $0x6d0] sm:$0xf]
    %v747 = vld [vmem:[#allocation5 + $0x6d4] sm:$0xf]
    %v748 = vld [vmem:[#allocation5 + $0x6d8] sm:$0xf]
    %v749 = vld [vmem:[#allocation5 + $0x6dc] sm:$0xf]
    %v750 = vld [vmem:[#allocation5 + $0x6e0] sm:$0xf]
    %v751 = vld [vmem:[#allocation5 + $0x6e4] sm:$0xf]
    %v752 = vld [vmem:[#allocation5 + $0x6e8] sm:$0xf]
    %v753 = vld [vmem:[#allocation5 + $0x6ec] sm:$0xf]
    %v754 = vld [vmem:[#allocation5 + $0x6f0] sm:$0xf]
    %v755 = vld [vmem:[#allocation5 + $0x6f4] sm:$0xf]
    %v756 = vld [vmem:[#allocation5 + $0x6f8] sm:$0xf]
    %v757 = vld [vmem:[#allocation5 + $0x6fc] sm:$0xf]
    %v758 = vld [vmem:[#allocation5 + $0x700] sm:$0xf]
    %v759 = vld [vmem:[#allocation5 + $0x704] sm:$0xf]
    %v760 = vld [vmem:[#allocation5 + $0x708] sm:$0xf]
    %v761 = vld [vmem:[#allocation5 + $0x70c] sm:$0xf]
    %v762 = vld [vmem:[#allocation5 + $0x710] sm:$0xf]
    %v763 = vld [vmem:[#allocation5 + $0x714] sm:$0xf]
    %v764 = vld [vmem:[#allocation5 + $0x718] sm:$0xf]
    %v765 = vld [vmem:[#allocation5 + $0x71c] sm:$0xf]
    %v766 = vld [vmem:[#allocation5 + $0x720] sm:$0xf]
    %v767 = vld [vmem:[#allocation5 + $0x724] sm:$0xf]
    %v768 = vld [vmem:[#allocation5 + $0x728] sm:$0xf]
    %v769 = vld [vmem:[#allocation5 + $0x72c] sm:$0xf]
    %v770 = vld [vmem:[#allocation5 + $0x730] sm:$0xf]
    %v771 = vld [vmem:[#allocation5 + $0x734] sm:$0xf]
    %v772 = vld [vmem:[#allocation5 + $0x738] sm:$0xf]
    %v773 = vld [vmem:[#allocation5 + $0x73c] sm:$0xf]
    %v774 = vld [vmem:[#allocation5 + $0x740] sm:$0xf]
    %v775 = vld [vmem:[#allocation5 + $0x744] sm:$0xf]
    %v776 = vld [vmem:[#allocation5 + $0x748] sm:$0xf]
    %v777 = vld [vmem:[#allocation5 + $0x74c] sm:$0xf]
    %v778 = vld [vmem:[#allocation5 + $0x750] sm:$0xf]
    %v779 = vld [vmem:[#allocation5 + $0x754] sm:$0xf]
    %v780 = vld [vmem:[#allocation5 + $0x758] sm:$0xf]
    %v781 = vld [vmem:[#allocation5 + $0x75c] sm:$0xf]
    %v782 = vld [vmem:[#allocation5 + $0x760] sm:$0xf]
    %v783 = vld [vmem:[#allocation5 + $0x764] sm:$0xf]
    %v784 = vld [vmem:[#allocation5 + $0x768] sm:$0xf]
    %v785 = vld [vmem:[#allocation5 + $0x76c] sm:$0xf]
    %v786 = vld [vmem:[#allocation5 + $0x770] sm:$0xf]
    %v787 = vld [vmem:[#allocation5 + $0x774] sm:$0xf]
    %v788 = vld [vmem:[#allocation5 + $0x778] sm:$0xf]
    %v789 = vld [vmem:[#allocation5 + $0x77c] sm:$0xf]
    %v790 = vld [vmem:[#allocation5 + $0x780] sm:$0xf]
    %v791 = vld [vmem:[#allocation5 + $0x784] sm:$0xf]
    %v792 = vld [vmem:[#allocation5 + $0x788] sm:$0xf]
    %v793 = vld [vmem:[#allocation5 + $0x78c] sm:$0xf]
    %v794 = vld [vmem:[#allocation5 + $0x790] sm:$0xf]
    %v795 = vld [vmem:[#allocation5 + $0x794] sm:$0xf]
    %v796 = vld [vmem:[#allocation5 + $0x798] sm:$0xf]
    %v797 = vld [vmem:[#allocation5 + $0x79c] sm:$0xf]
    %v798 = vld [vmem:[#allocation5 + $0x7a0] sm:$0xf]
    %v799 = vld [vmem:[#allocation5 + $0x7a4] sm:$0xf]
    %v800 = vld [vmem:[#allocation5 + $0x7a8] sm:$0xf]
    %v801 = vld [vmem:[#allocation5 + $0x7ac] sm:$0xf]
    %v802 = vld [vmem:[#allocation5 + $0x7b0] sm:$0xf]
    %v803 = vld [vmem:[#allocation5 + $0x7b4] sm:$0xf]
    %v804 = vld [vmem:[#allocation5 + $0x7b8] sm:$0xf]
    %v805 = vld [vmem:[#allocation5 + $0x7bc] sm:$0xf]
    %v806 = vld [vmem:[#allocation5 + $0x7c0] sm:$0xf]
    %v807 = vld [vmem:[#allocation5 + $0x7c4] sm:$0xf]
    %v808 = vld [vmem:[#allocation5 + $0x7c8] sm:$0xf]
    %v809 = vld [vmem:[#allocation5 + $0x7cc] sm:$0xf]
    %v810 = vld [vmem:[#allocation5 + $0x7d0] sm:$0xf]
    %v811 = vld [vmem:[#allocation5 + $0x7d4] sm:$0xf]
    %v812 = vld [vmem:[#allocation5 + $0x7d8] sm:$0xf]
    %v813 = vld [vmem:[#allocation5 + $0x7dc] sm:$0xf]
    %v814 = vld [vmem:[#allocation5 + $0x7e0] sm:$0xf]
    %v815 = vld [vmem:[#allocation5 + $0x7e4] sm:$0xf]
    %v816 = vld [vmem:[#allocation5 + $0x7e8] sm:$0xf]
    %v817 = vld [vmem:[#allocation5 + $0x7ec] sm:$0xf]
    %v818 = vld [vmem:[#allocation5 + $0x7f0] sm:$0xf]
    %v819 = vld [vmem:[#allocation5 + $0x7f4] sm:$0xf]
    %v820 = vld [vmem:[#allocation5 + $0x7f8] sm:$0xf]
    %v821 = vld [vmem:[#allocation5 + $0x7fc] sm:$0xf]
    %v822 = vld [vmem:[#allocation5 + $0x800] sm:$0xf]
    %v823 = vld [vmem:[#allocation5 + $0x804] sm:$0xf]
    %v824 = vld [vmem:[#allocation5 + $0x808] sm:$0xf]
    %v825 = vld [vmem:[#allocation5 + $0x80c] sm:$0xf]
    %v826 = vld [vmem:[#allocation5 + $0x810] sm:$0xf]
    %v827 = vld [vmem:[#allocation5 + $0x814] sm:$0xf]
    %v828 = vld [vmem:[#allocation5 + $0x818] sm:$0xf]
    %v829 = vld [vmem:[#allocation5 + $0x81c] sm:$0xf]
    %v830 = vld [vmem:[#allocation5 + $0x820] sm:$0xf]
    %v831 = vld [vmem:[#allocation5 + $0x824] sm:$0xf]
    %v832 = vld [vmem:[#allocation5 + $0x828] sm:$0xf]
    %v833 = vld [vmem:[#allocation5 + $0x82c] sm:$0xf]
    %v834 = vld [vmem:[#allocation5 + $0x830] sm:$0xf]
    %v835 = vld [vmem:[#allocation5 + $0x834] sm:$0xf]
    %v836 = vld [vmem:[#allocation5 + $0x838] sm:$0xf]
    %v837 = vld [vmem:[#allocation5 + $0x83c] sm:$0xf]
    %v838 = vld [vmem:[#allocation5 + $0x840] sm:$0xf]
    %v839 = vld [vmem:[#allocation5 + $0x844] sm:$0xf]
    %v840 = vld [vmem:[#allocation5 + $0x848] sm:$0xf]
    %v841 = vld [vmem:[#allocation5 + $0x84c] sm:$0xf]
    %v842 = vld [vmem:[#allocation5 + $0x850] sm:$0xf]
    %v843 = vld [vmem:[#allocation5 + $0x854] sm:$0xf]
    %v844 = vld [vmem:[#allocation5 + $0x858] sm:$0xf]
    %v845 = vld [vmem:[#allocation5 + $0x85c] sm:$0xf]
    %v846 = vld [vmem:[#allocation5 + $0x860] sm:$0xf]
    %v847 = vld [vmem:[#allocation5 + $0x864] sm:$0xf]
    %v848 = vld [vmem:[#allocation5 + $0x868] sm:$0xf]
    %v849 = vld [vmem:[#allocation5 + $0x86c] sm:$0xf]
    %v850 = vld [vmem:[#allocation5 + $0x870] sm:$0xf]
    %v851 = vld [vmem:[#allocation5 + $0x874] sm:$0xf]
    %v852 = vld [vmem:[#allocation5 + $0x878] sm:$0xf]
    %v853 = vld [vmem:[#allocation5 + $0x87c] sm:$0xf]
    %v854 = vld [vmem:[#allocation5 + $0x880] sm:$0xf]
    %v855 = vld [vmem:[#allocation5 + $0x884] sm:$0xf]
    %v856 = vld [vmem:[#allocation5 + $0x888] sm:$0xf]
    %v857 = vld [vmem:[#allocation5 + $0x88c] sm:$0xf]
    %v858 = vld [vmem:[#allocation5 + $0x890] sm:$0xf]
    %v859 = vld [vmem:[#allocation5 + $0x894] sm:$0xf]
    %v860 = vld [vmem:[#allocation5 + $0x898] sm:$0xf]
    %v861 = vld [vmem:[#allocation5 + $0x89c] sm:$0xf]
    %v862 = vld [vmem:[#allocation5 + $0x8a0] sm:$0xf]
    %v863 = vld [vmem:[#allocation5 + $0x8a4] sm:$0xf]
    %v864 = vld [vmem:[#allocation5 + $0x8a8] sm:$0xf]
    %v865 = vld [vmem:[#allocation5 + $0x8ac] sm:$0xf]
    %v866 = vld [vmem:[#allocation5 + $0x8b0] sm:$0xf]
    %v867 = vld [vmem:[#allocation5 + $0x8b4] sm:$0xf]
    %v868 = vld [vmem:[#allocation5 + $0x8b8] sm:$0xf]
    %v869 = vld [vmem:[#allocation5 + $0x8bc] sm:$0xf]
    %v870 = vld [vmem:[#allocation5 + $0x8c0] sm:$0xf]
    %v871 = vld [vmem:[#allocation5 + $0x8c4] sm:$0xf]
    %v872 = vld [vmem:[#allocation5 + $0x8c8] sm:$0xf]
    %v873 = vld [vmem:[#allocation5 + $0x8cc] sm:$0xf]
    %v874 = vld [vmem:[#allocation5 + $0x8d0] sm:$0xf]
    %v875 = vld [vmem:[#allocation5 + $0x8d4] sm:$0xf]
    %v876 = vld [vmem:[#allocation5 + $0x8d8] sm:$0xf]
    %v877 = vld [vmem:[#allocation5 + $0x8dc] sm:$0xf]
    %v878 = vld [vmem:[#allocation5 + $0x8e0] sm:$0xf]
    %v879 = vld [vmem:[#allocation5 + $0x8e4] sm:$0xf]
    %v880 = vld [vmem:[#allocation5 + $0x8e8] sm:$0xf]
    %v881 = vld [vmem:[#allocation5 + $0x8ec] sm:$0xf]
    %v882 = vld [vmem:[#allocation5 + $0x8f0] sm:$0xf]
    %v883 = vld [vmem:[#allocation5 + $0x8f4] sm:$0xf]
    %v884 = vld [vmem:[#allocation5 + $0x8f8] sm:$0xf]
    %v885 = vld [vmem:[#allocation5 + $0x8fc] sm:$0xf]
    %v886 = vld [vmem:[#allocation5 + $0x900] sm:$0xf]
    %v887 = vld [vmem:[#allocation5 + $0x904] sm:$0xf]
    %v888 = vld [vmem:[#allocation5 + $0x908] sm:$0xf]
    %v889 = vld [vmem:[#allocation5 + $0x90c] sm:$0xf]
    %v890 = vld [vmem:[#allocation5 + $0x910] sm:$0xf]
    %v891 = vld [vmem:[#allocation5 + $0x914] sm:$0xf]
    %v892 = vld [vmem:[#allocation5 + $0x918] sm:$0xf]
    %v893 = vld [vmem:[#allocation5 + $0x91c] sm:$0xf]
    %v894 = vld [vmem:[#allocation5 + $0x920] sm:$0xf]
    %v895 = vld [vmem:[#allocation5 + $0x924] sm:$0xf]
    %v896 = vld [vmem:[#allocation5 + $0x928] sm:$0xf]
    %v897 = vld [vmem:[#allocation5 + $0x92c] sm:$0xf]
    %v898 = vld [vmem:[#allocation5 + $0x930] sm:$0xf]
    %v899 = vld [vmem:[#allocation5 + $0x934] sm:$0xf]
    %v900 = vld [vmem:[#allocation5 + $0x938] sm:$0xf]
    %v901 = vld [vmem:[#allocation5 + $0x93c] sm:$0xf]
    %v902 = vld [vmem:[#allocation5 + $0x940] sm:$0xf]
    %v903 = vld [vmem:[#allocation5 + $0x944] sm:$0xf]
    %v904 = vld [vmem:[#allocation5 + $0x948] sm:$0xf]
    %v905 = vld [vmem:[#allocation5 + $0x94c] sm:$0xf]
    %v906 = vld [vmem:[#allocation5 + $0x950] sm:$0xf]
    %v907 = vld [vmem:[#allocation5 + $0x954] sm:$0xf]
    %v908 = vld [vmem:[#allocation5 + $0x958] sm:$0xf]
    %v909 = vld [vmem:[#allocation5 + $0x95c] sm:$0xf]
    %v910 = vld [vmem:[#allocation7] sm:$0x1]
    %v912 = vlaneseq
    %v913 = vshrl.u32 %v912, 7
    %v914 = vsub.s32 0, %v913
    %v915 = vrot.slane %v910, %v914
    %v1517 = vunpack.c.l.b16 %v310
    %v1518 = vunpack.c.l.b16 %v311
    %v1519 = vunpack.c.l.b16 %v312
    %v1520 = vunpack.c.l.b16 %v313
    %v1521 = vunpack.c.l.b16 %v314
    %v1522 = vunpack.c.l.b16 %v315
    %v1523 = vunpack.c.l.b16 %v316
    %v1524 = vunpack.c.l.b16 %v317
    %v1525 = vunpack.c.l.b16 %v318
    %v1526 = vunpack.c.l.b16 %v319
    %v1527 = vunpack.c.l.b16 %v320
    %v1528 = vunpack.c.l.b16 %v321
    %v1529 = vunpack.c.l.b16 %v322
    %v1530 = vunpack.c.l.b16 %v323
    %v1531 = vunpack.c.l.b16 %v324
    %v1532 = vunpack.c.l.b16 %v325
    %v1533 = vunpack.c.l.b16 %v326
    %v1534 = vunpack.c.l.b16 %v327
    %v1535 = vunpack.c.l.b16 %v328
    %v1536 = vunpack.c.l.b16 %v329
    %v1537 = vunpack.c.l.b16 %v330
    %v1538 = vunpack.c.l.b16 %v331
    %v1539 = vunpack.c.l.b16 %v332
    %v1540 = vunpack.c.l.b16 %v333
    %v1541 = vunpack.c.l.b16 %v334
    %v1542 = vunpack.c.l.b16 %v335
    %v1543 = vunpack.c.l.b16 %v336
    %v1544 = vunpack.c.l.b16 %v337
    %v1545 = vunpack.c.l.b16 %v338
    %v1546 = vunpack.c.l.b16 %v339
    %v1547 = vunpack.c.l.b16 %v340
    %v1548 = vunpack.c.l.b16 %v341
    %v1549 = vunpack.c.l.b16 %v342
    %v1550 = vunpack.c.l.b16 %v343
    %v1551 = vunpack.c.l.b16 %v344
    %v1552 = vunpack.c.l.b16 %v345
    %v1553 = vunpack.c.l.b16 %v346
    %v1554 = vunpack.c.l.b16 %v347
    %v1555 = vunpack.c.l.b16 %v348
    %v1556 = vunpack.c.l.b16 %v349
    %v1557 = vunpack.c.l.b16 %v350
    %v1558 = vunpack.c.l.b16 %v351
    %v1559 = vunpack.c.l.b16 %v352
    %v1560 = vunpack.c.l.b16 %v353
    %v1561 = vunpack.c.l.b16 %v354
    %v1562 = vunpack.c.l.b16 %v355
    %v1563 = vunpack.c.l.b16 %v356
    %v1564 = vunpack.c.l.b16 %v357
    %v1565 = vunpack.c.l.b16 %v358
    %v1566 = vunpack.c.l.b16 %v359
    %v1567 = vunpack.c.l.b16 %v360
    %v1568 = vunpack.c.l.b16 %v361
    %v1569 = vunpack.c.l.b16 %v362
    %v1570 = vunpack.c.l.b16 %v363
    %v1571 = vunpack.c.l.b16 %v364
    %v1572 = vunpack.c.l.b16 %v365
    %v1573 = vunpack.c.l.b16 %v366
    %v1574 = vunpack.c.l.b16 %v367
    %v1575 = vunpack.c.l.b16 %v368
    %v1576 = vunpack.c.l.b16 %v369
    %v1577 = vunpack.c.l.b16 %v370
    %v1578 = vunpack.c.l.b16 %v371
    %v1579 = vunpack.c.l.b16 %v372
    %v1580 = vunpack.c.l.b16 %v373
    %v1581 = vunpack.c.l.b16 %v374
    %v1582 = vunpack.c.l.b16 %v375
    %v1583 = vunpack.c.l.b16 %v376
    %v1584 = vunpack.c.l.b16 %v377
    %v1585 = vunpack.c.l.b16 %v378
    %v1586 = vunpack.c.l.b16 %v379
    %v1587 = vunpack.c.l.b16 %v380
    %v1588 = vunpack.c.l.b16 %v381
    %v1589 = vunpack.c.l.b16 %v382
    %v1590 = vunpack.c.l.b16 %v383
    %v1591 = vunpack.c.l.b16 %v384
    %v1592 = vunpack.c.l.b16 %v385
    %v1593 = vunpack.c.l.b16 %v386
    %v1594 = vunpack.c.l.b16 %v387
    %v1595 = vunpack.c.l.b16 %v388
    %v1596 = vunpack.c.l.b16 %v389
    %v1597 = vunpack.c.l.b16 %v390
    %v1598 = vunpack.c.l.b16 %v391
    %v1599 = vunpack.c.l.b16 %v392
    %v1600 = vunpack.c.l.b16 %v393
    %v1601 = vunpack.c.l.b16 %v394
    %v1602 = vunpack.c.l.b16 %v395
    %v1603 = vunpack.c.l.b16 %v396
    %v1604 = vunpack.c.l.b16 %v397
    %v1605 = vunpack.c.l.b16 %v398
    %v1606 = vunpack.c.l.b16 %v399
    %v1607 = vunpack.c.l.b16 %v400
    %v1608 = vunpack.c.l.b16 %v401
    %v1609 = vunpack.c.l.b16 %v402
    %v1610 = vunpack.c.l.b16 %v403
    %v1611 = vunpack.c.l.b16 %v404
    %v1612 = vunpack.c.l.b16 %v405
    %v1613 = vunpack.c.l.b16 %v406
    %v1614 = vunpack.c.l.b16 %v407
    %v1615 = vunpack.c.l.b16 %v408
    %v1616 = vunpack.c.l.b16 %v409
    %v1617 = vunpack.c.l.b16 %v410
    %v1618 = vunpack.c.l.b16 %v411
    %v1619 = vunpack.c.l.b16 %v412
    %v1620 = vunpack.c.l.b16 %v413
    %v1621 = vunpack.c.l.b16 %v414
    %v1622 = vunpack.c.l.b16 %v415
    %v1623 = vunpack.c.l.b16 %v416
    %v1624 = vunpack.c.l.b16 %v417
    %v1625 = vunpack.c.l.b16 %v418
    %v1626 = vunpack.c.l.b16 %v419
    %v1627 = vunpack.c.l.b16 %v420
    %v1628 = vunpack.c.l.b16 %v421
    %v1629 = vunpack.c.l.b16 %v422
    %v1630 = vunpack.c.l.b16 %v423
    %v1631 = vunpack.c.l.b16 %v424
    %v1632 = vunpack.c.l.b16 %v425
    %v1633 = vunpack.c.l.b16 %v426
    %v1634 = vunpack.c.l.b16 %v427
    %v1635 = vunpack.c.l.b16 %v428
    %v1636 = vunpack.c.l.b16 %v429
    %v1637 = vunpack.c.l.b16 %v430
    %v1638 = vunpack.c.l.b16 %v431
    %v1639 = vunpack.c.l.b16 %v432
    %v1640 = vunpack.c.l.b16 %v433
    %v1641 = vunpack.c.l.b16 %v434
    %v1642 = vunpack.c.l.b16 %v435
    %v1643 = vunpack.c.l.b16 %v436
    %v1644 = vunpack.c.l.b16 %v437
    %v1645 = vunpack.c.l.b16 %v438
    %v1646 = vunpack.c.l.b16 %v439
    %v1647 = vunpack.c.l.b16 %v440
    %v1648 = vunpack.c.l.b16 %v441
    %v1649 = vunpack.c.l.b16 %v442
    %v1650 = vunpack.c.l.b16 %v443
    %v1651 = vunpack.c.l.b16 %v444
    %v1652 = vunpack.c.l.b16 %v445
    %v1653 = vunpack.c.l.b16 %v446
    %v1654 = vunpack.c.l.b16 %v447
    %v1655 = vunpack.c.l.b16 %v448
    %v1656 = vunpack.c.l.b16 %v449
    %v1657 = vunpack.c.l.b16 %v450
    %v1658 = vunpack.c.l.b16 %v451
    %v1659 = vunpack.c.l.b16 %v452
    %v1660 = vunpack.c.l.b16 %v453
    %v1661 = vunpack.c.l.b16 %v454
    %v1662 = vunpack.c.l.b16 %v455
    %v1663 = vunpack.c.l.b16 %v456
    %v1664 = vunpack.c.l.b16 %v457
    %v1665 = vunpack.c.l.b16 %v458
    %v1666 = vunpack.c.l.b16 %v459
    %v1667 = vunpack.c.l.b16 %v460
    %v1668 = vunpack.c.l.b16 %v461
    %v1669 = vunpack.c.l.b16 %v462
    %v1670 = vunpack.c.l.b16 %v463
    %v1671 = vunpack.c.l.b16 %v464
    %v1672 = vunpack.c.l.b16 %v465
    %v1673 = vunpack.c.l.b16 %v466
    %v1674 = vunpack.c.l.b16 %v467
    %v1675 = vunpack.c.l.b16 %v468
    %v1676 = vunpack.c.l.b16 %v469
    %v1677 = vunpack.c.l.b16 %v470
    %v1678 = vunpack.c.l.b16 %v471
    %v1679 = vunpack.c.l.b16 %v472
    %v1680 = vunpack.c.l.b16 %v473
    %v1681 = vunpack.c.l.b16 %v474
    %v1682 = vunpack.c.l.b16 %v475
    %v1683 = vunpack.c.l.b16 %v476
    %v1684 = vunpack.c.l.b16 %v477
    %v1685 = vunpack.c.l.b16 %v478
    %v1686 = vunpack.c.l.b16 %v479
    %v1687 = vunpack.c.l.b16 %v480
    %v1688 = vunpack.c.l.b16 %v481
    %v1689 = vunpack.c.l.b16 %v482
    %v1690 = vunpack.c.l.b16 %v483
    %v1691 = vunpack.c.l.b16 %v484
    %v1692 = vunpack.c.l.b16 %v485
    %v1693 = vunpack.c.l.b16 %v486
    %v1694 = vunpack.c.l.b16 %v487
    %v1695 = vunpack.c.l.b16 %v488
    %v1696 = vunpack.c.l.b16 %v489
    %v1697 = vunpack.c.l.b16 %v490
    %v1698 = vunpack.c.l.b16 %v491
    %v1699 = vunpack.c.l.b16 %v492
    %v1700 = vunpack.c.l.b16 %v493
    %v1701 = vunpack.c.l.b16 %v494
    %v1702 = vunpack.c.l.b16 %v495
    %v1703 = vunpack.c.l.b16 %v496
    %v1704 = vunpack.c.l.b16 %v497
    %v1705 = vunpack.c.l.b16 %v498
    %v1706 = vunpack.c.l.b16 %v499
    %v1707 = vunpack.c.l.b16 %v500
    %v1708 = vunpack.c.l.b16 %v501
    %v1709 = vunpack.c.l.b16 %v502
    %v1710 = vunpack.c.l.b16 %v503
    %v1711 = vunpack.c.l.b16 %v504
    %v1712 = vunpack.c.l.b16 %v505
    %v1713 = vunpack.c.l.b16 %v506
    %v1714 = vunpack.c.l.b16 %v507
    %v1715 = vunpack.c.l.b16 %v508
    %v1716 = vunpack.c.l.b16 %v509
    %v1717 = vunpack.c.l.b16 %v510
    %v1718 = vunpack.c.l.b16 %v511
    %v1719 = vunpack.c.l.b16 %v512
    %v1720 = vunpack.c.l.b16 %v513
    %v1721 = vunpack.c.l.b16 %v514
    %v1722 = vunpack.c.l.b16 %v515
    %v1723 = vunpack.c.l.b16 %v516
    %v1724 = vunpack.c.l.b16 %v517
    %v1725 = vunpack.c.l.b16 %v518
    %v1726 = vunpack.c.l.b16 %v519
    %v1727 = vunpack.c.l.b16 %v520
    %v1728 = vunpack.c.l.b16 %v521
    %v1729 = vunpack.c.l.b16 %v522
    %v1730 = vunpack.c.l.b16 %v523
    %v1731 = vunpack.c.l.b16 %v524
    %v1732 = vunpack.c.l.b16 %v525
    %v1733 = vunpack.c.l.b16 %v526
    %v1734 = vunpack.c.l.b16 %v527
    %v1735 = vunpack.c.l.b16 %v528
    %v1736 = vunpack.c.l.b16 %v529
    %v1737 = vunpack.c.l.b16 %v530
    %v1738 = vunpack.c.l.b16 %v531
    %v1739 = vunpack.c.l.b16 %v532
    %v1740 = vunpack.c.l.b16 %v533
    %v1741 = vunpack.c.l.b16 %v534
    %v1742 = vunpack.c.l.b16 %v535
    %v1743 = vunpack.c.l.b16 %v536
    %v1744 = vunpack.c.l.b16 %v537
    %v1745 = vunpack.c.l.b16 %v538
    %v1746 = vunpack.c.l.b16 %v539
    %v1747 = vunpack.c.l.b16 %v540
    %v1748 = vunpack.c.l.b16 %v541
    %v1749 = vunpack.c.l.b16 %v542
    %v1750 = vunpack.c.l.b16 %v543
    %v1751 = vunpack.c.l.b16 %v544
    %v1752 = vunpack.c.l.b16 %v545
    %v1753 = vunpack.c.l.b16 %v546
    %v1754 = vunpack.c.l.b16 %v547
    %v1755 = vunpack.c.l.b16 %v548
    %v1756 = vunpack.c.l.b16 %v549
    %v1757 = vunpack.c.l.b16 %v550
    %v1758 = vunpack.c.l.b16 %v551
    %v1759 = vunpack.c.l.b16 %v552
    %v1760 = vunpack.c.l.b16 %v553
    %v1761 = vunpack.c.l.b16 %v554
    %v1762 = vunpack.c.l.b16 %v555
    %v1763 = vunpack.c.l.b16 %v556
    %v1764 = vunpack.c.l.b16 %v557
    %v1765 = vunpack.c.l.b16 %v558
    %v1766 = vunpack.c.l.b16 %v559
    %v1767 = vunpack.c.l.b16 %v560
    %v1768 = vunpack.c.l.b16 %v561
    %v1769 = vunpack.c.l.b16 %v562
    %v1770 = vunpack.c.l.b16 %v563
    %v1771 = vunpack.c.l.b16 %v564
    %v1772 = vunpack.c.l.b16 %v565
    %v1773 = vunpack.c.l.b16 %v566
    %v1774 = vunpack.c.l.b16 %v567
    %v1775 = vunpack.c.l.b16 %v568
    %v1776 = vunpack.c.l.b16 %v569
    %v1777 = vunpack.c.l.b16 %v570
    %v1778 = vunpack.c.l.b16 %v571
    %v1779 = vunpack.c.l.b16 %v572
    %v1780 = vunpack.c.l.b16 %v573
    %v1781 = vunpack.c.l.b16 %v574
    %v1782 = vunpack.c.l.b16 %v575
    %v1783 = vunpack.c.l.b16 %v576
    %v1784 = vunpack.c.l.b16 %v577
    %v1785 = vunpack.c.l.b16 %v578
    %v1786 = vunpack.c.l.b16 %v579
    %v1787 = vunpack.c.l.b16 %v580
    %v1788 = vunpack.c.l.b16 %v581
    %v1789 = vunpack.c.l.b16 %v582
    %v1790 = vunpack.c.l.b16 %v583
    %v1791 = vunpack.c.l.b16 %v584
    %v1792 = vunpack.c.l.b16 %v585
    %v1793 = vunpack.c.l.b16 %v586
    %v1794 = vunpack.c.l.b16 %v587
    %v1795 = vunpack.c.l.b16 %v588
    %v1796 = vunpack.c.l.b16 %v589
    %v1797 = vunpack.c.l.b16 %v590
    %v1798 = vunpack.c.l.b16 %v591
    %v1799 = vunpack.c.l.b16 %v592
    %v1800 = vunpack.c.l.b16 %v593
    %v1801 = vunpack.c.l.b16 %v594
    %v1802 = vunpack.c.l.b16 %v595
    %v1803 = vunpack.c.l.b16 %v596
    %v1804 = vunpack.c.l.b16 %v597
    %v1805 = vunpack.c.l.b16 %v598
    %v1806 = vunpack.c.l.b16 %v599
    %v1807 = vunpack.c.l.b16 %v600
    %v1808 = vunpack.c.l.b16 %v601
    %v1809 = vunpack.c.l.b16 %v602
    %v1810 = vunpack.c.l.b16 %v603
    %v1811 = vunpack.c.l.b16 %v604
    %v1812 = vunpack.c.l.b16 %v605
    %v1813 = vunpack.c.l.b16 %v606
    %v1814 = vunpack.c.l.b16 %v607
    %v1815 = vunpack.c.l.b16 %v608
    %v1816 = vunpack.c.l.b16 %v609
    %v1817 = vunpack.c.l.b16 %v610
    %v1818 = vunpack.c.l.b16 %v611
    %v1819 = vunpack.c.l.b16 %v612
    %v1820 = vunpack.c.l.b16 %v613
    %v1821 = vunpack.c.l.b16 %v614
    %v1822 = vunpack.c.l.b16 %v615
    %v1823 = vunpack.c.l.b16 %v616
    %v1824 = vunpack.c.l.b16 %v617
    %v1825 = vunpack.c.l.b16 %v618
    %v1826 = vunpack.c.l.b16 %v619
    %v1827 = vunpack.c.l.b16 %v620
    %v1828 = vunpack.c.l.b16 %v621
    %v1829 = vunpack.c.l.b16 %v622
    %v1830 = vunpack.c.l.b16 %v623
    %v1831 = vunpack.c.l.b16 %v624
    %v1832 = vunpack.c.l.b16 %v625
    %v1833 = vunpack.c.l.b16 %v626
    %v1834 = vunpack.c.l.b16 %v627
    %v1835 = vunpack.c.l.b16 %v628
    %v1836 = vunpack.c.l.b16 %v629
    %v1837 = vunpack.c.l.b16 %v630
    %v1838 = vunpack.c.l.b16 %v631
    %v1839 = vunpack.c.l.b16 %v632
    %v1840 = vunpack.c.l.b16 %v633
    %v1841 = vunpack.c.l.b16 %v634
    %v1842 = vunpack.c.l.b16 %v635
    %v1843 = vunpack.c.l.b16 %v636
    %v1844 = vunpack.c.l.b16 %v637
    %v1845 = vunpack.c.l.b16 %v638
    %v1846 = vunpack.c.l.b16 %v639
    %v1847 = vunpack.c.l.b16 %v640
    %v1848 = vunpack.c.l.b16 %v641
    %v1849 = vunpack.c.l.b16 %v642
    %v1850 = vunpack.c.l.b16 %v643
    %v1851 = vunpack.c.l.b16 %v644
    %v1852 = vunpack.c.l.b16 %v645
    %v1853 = vunpack.c.l.b16 %v646
    %v1854 = vunpack.c.l.b16 %v647
    %v1855 = vunpack.c.l.b16 %v648
    %v1856 = vunpack.c.l.b16 %v649
    %v1857 = vunpack.c.l.b16 %v650
    %v1858 = vunpack.c.l.b16 %v651
    %v1859 = vunpack.c.l.b16 %v652
    %v1860 = vunpack.c.l.b16 %v653
    %v1861 = vunpack.c.l.b16 %v654
    %v1862 = vunpack.c.l.b16 %v655
    %v1863 = vunpack.c.l.b16 %v656
    %v1864 = vunpack.c.l.b16 %v657
    %v1865 = vunpack.c.l.b16 %v658
    %v1866 = vunpack.c.l.b16 %v659
    %v1867 = vunpack.c.l.b16 %v660
    %v1868 = vunpack.c.l.b16 %v661
    %v1869 = vunpack.c.l.b16 %v662
    %v1870 = vunpack.c.l.b16 %v663
    %v1871 = vunpack.c.l.b16 %v664
    %v1872 = vunpack.c.l.b16 %v665
    %v1873 = vunpack.c.l.b16 %v666
    %v1874 = vunpack.c.l.b16 %v667
    %v1875 = vunpack.c.l.b16 %v668
    %v1876 = vunpack.c.l.b16 %v669
    %v1877 = vunpack.c.l.b16 %v670
    %v1878 = vunpack.c.l.b16 %v671
    %v1879 = vunpack.c.l.b16 %v672
    %v1880 = vunpack.c.l.b16 %v673
    %v1881 = vunpack.c.l.b16 %v674
    %v1882 = vunpack.c.l.b16 %v675
    %v1883 = vunpack.c.l.b16 %v676
    %v1884 = vunpack.c.l.b16 %v677
    %v1885 = vunpack.c.l.b16 %v678
    %v1886 = vunpack.c.l.b16 %v679
    %v1887 = vunpack.c.l.b16 %v680
    %v1888 = vunpack.c.l.b16 %v681
    %v1889 = vunpack.c.l.b16 %v682
    %v1890 = vunpack.c.l.b16 %v683
    %v1891 = vunpack.c.l.b16 %v684
    %v1892 = vunpack.c.l.b16 %v685
    %v1893 = vunpack.c.l.b16 %v686
    %v1894 = vunpack.c.l.b16 %v687
    %v1895 = vunpack.c.l.b16 %v688
    %v1896 = vunpack.c.l.b16 %v689
    %v1897 = vunpack.c.l.b16 %v690
    %v1898 = vunpack.c.l.b16 %v691
    %v1899 = vunpack.c.l.b16 %v692
    %v1900 = vunpack.c.l.b16 %v693
    %v1901 = vunpack.c.l.b16 %v694
    %v1902 = vunpack.c.l.b16 %v695
    %v1903 = vunpack.c.l.b16 %v696
    %v1904 = vunpack.c.l.b16 %v697
    %v1905 = vunpack.c.l.b16 %v698
    %v1906 = vunpack.c.l.b16 %v699
    %v1907 = vunpack.c.l.b16 %v700
    %v1908 = vunpack.c.l.b16 %v701
    %v1909 = vunpack.c.l.b16 %v702
    %v1910 = vunpack.c.l.b16 %v703
    %v1911 = vunpack.c.l.b16 %v704
    %v1912 = vunpack.c.l.b16 %v705
    %v1913 = vunpack.c.l.b16 %v706
    %v1914 = vunpack.c.l.b16 %v707
    %v1915 = vunpack.c.l.b16 %v708
    %v1916 = vunpack.c.l.b16 %v709
    %v1917 = vunpack.c.l.b16 %v710
    %v1918 = vunpack.c.l.b16 %v711
    %v1919 = vunpack.c.l.b16 %v712
    %v1920 = vunpack.c.l.b16 %v713
    %v1921 = vunpack.c.l.b16 %v714
    %v1922 = vunpack.c.l.b16 %v715
    %v1923 = vunpack.c.l.b16 %v716
    %v1924 = vunpack.c.l.b16 %v717
    %v1925 = vunpack.c.l.b16 %v718
    %v1926 = vunpack.c.l.b16 %v719
    %v1927 = vunpack.c.l.b16 %v720
    %v1928 = vunpack.c.l.b16 %v721
    %v1929 = vunpack.c.l.b16 %v722
    %v1930 = vunpack.c.l.b16 %v723
    %v1931 = vunpack.c.l.b16 %v724
    %v1932 = vunpack.c.l.b16 %v725
    %v1933 = vunpack.c.l.b16 %v726
    %v1934 = vunpack.c.l.b16 %v727
    %v1935 = vunpack.c.l.b16 %v728
    %v1936 = vunpack.c.l.b16 %v729
    %v1937 = vunpack.c.l.b16 %v730
    %v1938 = vunpack.c.l.b16 %v731
    %v1939 = vunpack.c.l.b16 %v732
    %v1940 = vunpack.c.l.b16 %v733
    %v1941 = vunpack.c.l.b16 %v734
    %v1942 = vunpack.c.l.b16 %v735
    %v1943 = vunpack.c.l.b16 %v736
    %v1944 = vunpack.c.l.b16 %v737
    %v1945 = vunpack.c.l.b16 %v738
    %v1946 = vunpack.c.l.b16 %v739
    %v1947 = vunpack.c.l.b16 %v740
    %v1948 = vunpack.c.l.b16 %v741
    %v1949 = vunpack.c.l.b16 %v742
    %v1950 = vunpack.c.l.b16 %v743
    %v1951 = vunpack.c.l.b16 %v744
    %v1952 = vunpack.c.l.b16 %v745
    %v1953 = vunpack.c.l.b16 %v746
    %v1954 = vunpack.c.l.b16 %v747
    %v1955 = vunpack.c.l.b16 %v748
    %v1956 = vunpack.c.l.b16 %v749
    %v1957 = vunpack.c.l.b16 %v750
    %v1958 = vunpack.c.l.b16 %v751
    %v1959 = vunpack.c.l.b16 %v752
    %v1960 = vunpack.c.l.b16 %v753
    %v1961 = vunpack.c.l.b16 %v754
    %v1962 = vunpack.c.l.b16 %v755
    %v1963 = vunpack.c.l.b16 %v756
    %v1964 = vunpack.c.l.b16 %v757
    %v1965 = vunpack.c.l.b16 %v758
    %v1966 = vunpack.c.l.b16 %v759
    %v1967 = vunpack.c.l.b16 %v760
    %v1968 = vunpack.c.l.b16 %v761
    %v1969 = vunpack.c.l.b16 %v762
    %v1970 = vunpack.c.l.b16 %v763
    %v1971 = vunpack.c.l.b16 %v764
    %v1972 = vunpack.c.l.b16 %v765
    %v1973 = vunpack.c.l.b16 %v766
    %v1974 = vunpack.c.l.b16 %v767
    %v1975 = vunpack.c.l.b16 %v768
    %v1976 = vunpack.c.l.b16 %v769
    %v1977 = vunpack.c.l.b16 %v770
    %v1978 = vunpack.c.l.b16 %v771
    %v1979 = vunpack.c.l.b16 %v772
    %v1980 = vunpack.c.l.b16 %v773
    %v1981 = vunpack.c.l.b16 %v774
    %v1982 = vunpack.c.l.b16 %v775
    %v1983 = vunpack.c.l.b16 %v776
    %v1984 = vunpack.c.l.b16 %v777
    %v1985 = vunpack.c.l.b16 %v778
    %v1986 = vunpack.c.l.b16 %v779
    %v1987 = vunpack.c.l.b16 %v780
    %v1988 = vunpack.c.l.b16 %v781
    %v1989 = vunpack.c.l.b16 %v782
    %v1990 = vunpack.c.l.b16 %v783
    %v1991 = vunpack.c.l.b16 %v784
    %v1992 = vunpack.c.l.b16 %v785
    %v1993 = vunpack.c.l.b16 %v786
    %v1994 = vunpack.c.l.b16 %v787
    %v1995 = vunpack.c.l.b16 %v788
    %v1996 = vunpack.c.l.b16 %v789
    %v1997 = vunpack.c.l.b16 %v790
    %v1998 = vunpack.c.l.b16 %v791
    %v1999 = vunpack.c.l.b16 %v792
    %v2000 = vunpack.c.l.b16 %v793
    %v2001 = vunpack.c.l.b16 %v794
    %v2002 = vunpack.c.l.b16 %v795
    %v2003 = vunpack.c.l.b16 %v796
    %v2004 = vunpack.c.l.b16 %v797
    %v2005 = vunpack.c.l.b16 %v798
    %v2006 = vunpack.c.l.b16 %v799
    %v2007 = vunpack.c.l.b16 %v800
    %v2008 = vunpack.c.l.b16 %v801
    %v2009 = vunpack.c.l.b16 %v802
    %v2010 = vunpack.c.l.b16 %v803
    %v2011 = vunpack.c.l.b16 %v804
    %v2012 = vunpack.c.l.b16 %v805
    %v2013 = vunpack.c.l.b16 %v806
    %v2014 = vunpack.c.l.b16 %v807
    %v2015 = vunpack.c.l.b16 %v808
    %v2016 = vunpack.c.l.b16 %v809
    %v2017 = vunpack.c.l.b16 %v810
    %v2018 = vunpack.c.l.b16 %v811
    %v2019 = vunpack.c.l.b16 %v812
    %v2020 = vunpack.c.l.b16 %v813
    %v2021 = vunpack.c.l.b16 %v814
    %v2022 = vunpack.c.l.b16 %v815
    %v2023 = vunpack.c.l.b16 %v816
    %v2024 = vunpack.c.l.b16 %v817
    %v2025 = vunpack.c.l.b16 %v818
    %v2026 = vunpack.c.l.b16 %v819
    %v2027 = vunpack.c.l.b16 %v820
    %v2028 = vunpack.c.l.b16 %v821
    %v2029 = vunpack.c.l.b16 %v822
    %v2030 = vunpack.c.l.b16 %v823
    %v2031 = vunpack.c.l.b16 %v824
    %v2032 = vunpack.c.l.b16 %v825
    %v2033 = vunpack.c.l.b16 %v826
    %v2034 = vunpack.c.l.b16 %v827
    %v2035 = vunpack.c.l.b16 %v828
    %v2036 = vunpack.c.l.b16 %v829
    %v2037 = vunpack.c.l.b16 %v830
    %v2038 = vunpack.c.l.b16 %v831
    %v2039 = vunpack.c.l.b16 %v832
    %v2040 = vunpack.c.l.b16 %v833
    %v2041 = vunpack.c.l.b16 %v834
    %v2042 = vunpack.c.l.b16 %v835
    %v2043 = vunpack.c.l.b16 %v836
    %v2044 = vunpack.c.l.b16 %v837
    %v2045 = vunpack.c.l.b16 %v838
    %v2046 = vunpack.c.l.b16 %v839
    %v2047 = vunpack.c.l.b16 %v840
    %v2048 = vunpack.c.l.b16 %v841
    %v2049 = vunpack.c.l.b16 %v842
    %v2050 = vunpack.c.l.b16 %v843
    %v2051 = vunpack.c.l.b16 %v844
    %v2052 = vunpack.c.l.b16 %v845
    %v2053 = vunpack.c.l.b16 %v846
    %v2054 = vunpack.c.l.b16 %v847
    %v2055 = vunpack.c.l.b16 %v848
    %v2056 = vunpack.c.l.b16 %v849
    %v2057 = vunpack.c.l.b16 %v850
    %v2058 = vunpack.c.l.b16 %v851
    %v2059 = vunpack.c.l.b16 %v852
    %v2060 = vunpack.c.l.b16 %v853
    %v2061 = vunpack.c.l.b16 %v854
    %v2062 = vunpack.c.l.b16 %v855
    %v2063 = vunpack.c.l.b16 %v856
    %v2064 = vunpack.c.l.b16 %v857
    %v2065 = vunpack.c.l.b16 %v858
    %v2066 = vunpack.c.l.b16 %v859
    %v2067 = vunpack.c.l.b16 %v860
    %v2068 = vunpack.c.l.b16 %v861
    %v2069 = vunpack.c.l.b16 %v862
    %v2070 = vunpack.c.l.b16 %v863
    %v2071 = vunpack.c.l.b16 %v864
    %v2072 = vunpack.c.l.b16 %v865
    %v2073 = vunpack.c.l.b16 %v866
    %v2074 = vunpack.c.l.b16 %v867
    %v2075 = vunpack.c.l.b16 %v868
    %v2076 = vunpack.c.l.b16 %v869
    %v2077 = vunpack.c.l.b16 %v870
    %v2078 = vunpack.c.l.b16 %v871
    %v2079 = vunpack.c.l.b16 %v872
    %v2080 = vunpack.c.l.b16 %v873
    %v2081 = vunpack.c.l.b16 %v874
    %v2082 = vunpack.c.l.b16 %v875
    %v2083 = vunpack.c.l.b16 %v876
    %v2084 = vunpack.c.l.b16 %v877
    %v2085 = vunpack.c.l.b16 %v878
    %v2086 = vunpack.c.l.b16 %v879
    %v2087 = vunpack.c.l.b16 %v880
    %v2088 = vunpack.c.l.b16 %v881
    %v2089 = vunpack.c.l.b16 %v882
    %v2090 = vunpack.c.l.b16 %v883
    %v2091 = vunpack.c.l.b16 %v884
    %v2092 = vunpack.c.l.b16 %v885
    %v2093 = vunpack.c.l.b16 %v886
    %v2094 = vunpack.c.l.b16 %v887
    %v2095 = vunpack.c.l.b16 %v888
    %v2096 = vunpack.c.l.b16 %v889
    %v2097 = vunpack.c.l.b16 %v890
    %v2098 = vunpack.c.l.b16 %v891
    %v2099 = vunpack.c.l.b16 %v892
    %v2100 = vunpack.c.l.b16 %v893
    %v2101 = vunpack.c.l.b16 %v894
    %v2102 = vunpack.c.l.b16 %v895
    %v2103 = vunpack.c.l.b16 %v896
    %v2104 = vunpack.c.l.b16 %v897
    %v2105 = vunpack.c.l.b16 %v898
    %v2106 = vunpack.c.l.b16 %v899
    %v2107 = vunpack.c.l.b16 %v900
    %v2108 = vunpack.c.l.b16 %v901
    %v2109 = vunpack.c.l.b16 %v902
    %v2110 = vunpack.c.l.b16 %v903
    %v2111 = vunpack.c.l.b16 %v904
    %v2112 = vunpack.c.l.b16 %v905
    %v2113 = vunpack.c.l.b16 %v906
    %v2114 = vunpack.c.l.b16 %v907
    %v2115 = vunpack.c.l.b16 %v908
    %v2116 = vunpack.c.l.b16 %v909
    %v2117 = vpack.c.b16 %v1518, %v1517
    %v2118 = vpack.c.b16 %v1520, %v1519
    %v2119 = vpack.c.b16 %v1522, %v1521
    %v2120 = vpack.c.b16 %v1524, %v1523
    %v2121 = vpack.c.b16 %v1526, %v1525
    %v2122 = vpack.c.b16 %v1528, %v1527
    %v2123 = vpack.c.b16 %v1530, %v1529
    %v2124 = vpack.c.b16 %v1532, %v1531
    %v2125 = vpack.c.b16 %v1534, %v1533
    %v2126 = vpack.c.b16 %v1536, %v1535
    %v2127 = vpack.c.b16 %v1538, %v1537
    %v2128 = vpack.c.b16 %v1540, %v1539
    %v2129 = vpack.c.b16 %v1542, %v1541
    %v2130 = vpack.c.b16 %v1544, %v1543
    %v2131 = vpack.c.b16 %v1546, %v1545
    %v2132 = vpack.c.b16 %v1548, %v1547
    %v2133 = vpack.c.b16 %v1550, %v1549
    %v2134 = vpack.c.b16 %v1552, %v1551
    %v2135 = vpack.c.b16 %v1554, %v1553
    %v2136 = vpack.c.b16 %v1556, %v1555
    %v2137 = vpack.c.b16 %v1558, %v1557
    %v2138 = vpack.c.b16 %v1560, %v1559
    %v2139 = vpack.c.b16 %v1562, %v1561
    %v2140 = vpack.c.b16 %v1564, %v1563
    %v2141 = vpack.c.b16 %v1566, %v1565
    %v2142 = vpack.c.b16 %v1568, %v1567
    %v2143 = vpack.c.b16 %v1570, %v1569
    %v2144 = vpack.c.b16 %v1572, %v1571
    %v2145 = vpack.c.b16 %v1574, %v1573
    %v2146 = vpack.c.b16 %v1576, %v1575
    %v2147 = vpack.c.b16 %v1578, %v1577
    %v2148 = vpack.c.b16 %v1580, %v1579
    %v2149 = vpack.c.b16 %v1582, %v1581
    %v2150 = vpack.c.b16 %v1584, %v1583
    %v2151 = vpack.c.b16 %v1586, %v1585
    %v2152 = vpack.c.b16 %v1588, %v1587
    %v2153 = vpack.c.b16 %v1590, %v1589
    %v2154 = vpack.c.b16 %v1592, %v1591
    %v2155 = vpack.c.b16 %v1594, %v1593
    %v2156 = vpack.c.b16 %v1596, %v1595
    %v2157 = vpack.c.b16 %v1598, %v1597
    %v2158 = vpack.c.b16 %v1600, %v1599
    %v2159 = vpack.c.b16 %v1602, %v1601
    %v2160 = vpack.c.b16 %v1604, %v1603
    %v2161 = vpack.c.b16 %v1606, %v1605
    %v2162 = vpack.c.b16 %v1608, %v1607
    %v2163 = vpack.c.b16 %v1610, %v1609
    %v2164 = vpack.c.b16 %v1612, %v1611
    %v2165 = vpack.c.b16 %v1614, %v1613
    %v2166 = vpack.c.b16 %v1616, %v1615
    %v2167 = vpack.c.b16 %v1618, %v1617
    %v2168 = vpack.c.b16 %v1620, %v1619
    %v2169 = vpack.c.b16 %v1622, %v1621
    %v2170 = vpack.c.b16 %v1624, %v1623
    %v2171 = vpack.c.b16 %v1626, %v1625
    %v2172 = vpack.c.b16 %v1628, %v1627
    %v2173 = vpack.c.b16 %v1630, %v1629
    %v2174 = vpack.c.b16 %v1632, %v1631
    %v2175 = vpack.c.b16 %v1634, %v1633
    %v2176 = vpack.c.b16 %v1636, %v1635
    %v2177 = vpack.c.b16 %v1638, %v1637
    %v2178 = vpack.c.b16 %v1640, %v1639
    %v2179 = vpack.c.b16 %v1642, %v1641
    %v2180 = vpack.c.b16 %v1644, %v1643
    %v2181 = vpack.c.b16 %v1646, %v1645
    %v2182 = vpack.c.b16 %v1648, %v1647
    %v2183 = vpack.c.b16 %v1650, %v1649
    %v2184 = vpack.c.b16 %v1652, %v1651
    %v2185 = vpack.c.b16 %v1654, %v1653
    %v2186 = vpack.c.b16 %v1656, %v1655
    %v2187 = vpack.c.b16 %v1658, %v1657
    %v2188 = vpack.c.b16 %v1660, %v1659
    %v2189 = vpack.c.b16 %v1662, %v1661
    %v2190 = vpack.c.b16 %v1664, %v1663
    %v2191 = vpack.c.b16 %v1666, %v1665
    %v2192 = vpack.c.b16 %v1668, %v1667
    %v2193 = vpack.c.b16 %v1670, %v1669
    %v2194 = vpack.c.b16 %v1672, %v1671
    %v2195 = vpack.c.b16 %v1674, %v1673
    %v2196 = vpack.c.b16 %v1676, %v1675
    %v2197 = vpack.c.b16 %v1678, %v1677
    %v2198 = vpack.c.b16 %v1680, %v1679
    %v2199 = vpack.c.b16 %v1682, %v1681
    %v2200 = vpack.c.b16 %v1684, %v1683
    %v2201 = vpack.c.b16 %v1686, %v1685
    %v2202 = vpack.c.b16 %v1688, %v1687
    %v2203 = vpack.c.b16 %v1690, %v1689
    %v2204 = vpack.c.b16 %v1692, %v1691
    %v2205 = vpack.c.b16 %v1694, %v1693
    %v2206 = vpack.c.b16 %v1696, %v1695
    %v2207 = vpack.c.b16 %v1698, %v1697
    %v2208 = vpack.c.b16 %v1700, %v1699
    %v2209 = vpack.c.b16 %v1702, %v1701
    %v2210 = vpack.c.b16 %v1704, %v1703
    %v2211 = vpack.c.b16 %v1706, %v1705
    %v2212 = vpack.c.b16 %v1708, %v1707
    %v2213 = vpack.c.b16 %v1710, %v1709
    %v2214 = vpack.c.b16 %v1712, %v1711
    %v2215 = vpack.c.b16 %v1714, %v1713
    %v2216 = vpack.c.b16 %v1716, %v1715
    %v2217 = vpack.c.b16 %v1718, %v1717
    %v2218 = vpack.c.b16 %v1720, %v1719
    %v2219 = vpack.c.b16 %v1722, %v1721
    %v2220 = vpack.c.b16 %v1724, %v1723
    %v2221 = vpack.c.b16 %v1726, %v1725
    %v2222 = vpack.c.b16 %v1728, %v1727
    %v2223 = vpack.c.b16 %v1730, %v1729
    %v2224 = vpack.c.b16 %v1732, %v1731
    %v2225 = vpack.c.b16 %v1734, %v1733
    %v2226 = vpack.c.b16 %v1736, %v1735
    %v2227 = vpack.c.b16 %v1738, %v1737
    %v2228 = vpack.c.b16 %v1740, %v1739
    %v2229 = vpack.c.b16 %v1742, %v1741
    %v2230 = vpack.c.b16 %v1744, %v1743
    %v2231 = vpack.c.b16 %v1746, %v1745
    %v2232 = vpack.c.b16 %v1748, %v1747
    %v2233 = vpack.c.b16 %v1750, %v1749
    %v2234 = vpack.c.b16 %v1752, %v1751
    %v2235 = vpack.c.b16 %v1754, %v1753
    %v2236 = vpack.c.b16 %v1756, %v1755
    %v2237 = vpack.c.b16 %v1758, %v1757
    %v2238 = vpack.c.b16 %v1760, %v1759
    %v2239 = vpack.c.b16 %v1762, %v1761
    %v2240 = vpack.c.b16 %v1764, %v1763
    %v2241 = vpack.c.b16 %v1766, %v1765
    %v2242 = vpack.c.b16 %v1768, %v1767
    %v2243 = vpack.c.b16 %v1770, %v1769
    %v2244 = vpack.c.b16 %v1772, %v1771
    %v2245 = vpack.c.b16 %v1774, %v1773
    %v2246 = vpack.c.b16 %v1776, %v1775
    %v2247 = vpack.c.b16 %v1778, %v1777
    %v2248 = vpack.c.b16 %v1780, %v1779
    %v2249 = vpack.c.b16 %v1782, %v1781
    %v2250 = vpack.c.b16 %v1784, %v1783
    %v2251 = vpack.c.b16 %v1786, %v1785
    %v2252 = vpack.c.b16 %v1788, %v1787
    %v2253 = vpack.c.b16 %v1790, %v1789
    %v2254 = vpack.c.b16 %v1792, %v1791
    %v2255 = vpack.c.b16 %v1794, %v1793
    %v2256 = vpack.c.b16 %v1796, %v1795
    %v2257 = vpack.c.b16 %v1798, %v1797
    %v2258 = vpack.c.b16 %v1800, %v1799
    %v2259 = vpack.c.b16 %v1802, %v1801
    %v2260 = vpack.c.b16 %v1804, %v1803
    %v2261 = vpack.c.b16 %v1806, %v1805
    %v2262 = vpack.c.b16 %v1808, %v1807
    %v2263 = vpack.c.b16 %v1810, %v1809
    %v2264 = vpack.c.b16 %v1812, %v1811
    %v2265 = vpack.c.b16 %v1814, %v1813
    %v2266 = vpack.c.b16 %v1816, %v1815
    %v2267 = vpack.c.b16 %v1818, %v1817
    %v2268 = vpack.c.b16 %v1820, %v1819
    %v2269 = vpack.c.b16 %v1822, %v1821
    %v2270 = vpack.c.b16 %v1824, %v1823
    %v2271 = vpack.c.b16 %v1826, %v1825
    %v2272 = vpack.c.b16 %v1828, %v1827
    %v2273 = vpack.c.b16 %v1830, %v1829
    %v2274 = vpack.c.b16 %v1832, %v1831
    %v2275 = vpack.c.b16 %v1834, %v1833
    %v2276 = vpack.c.b16 %v1836, %v1835
    %v2277 = vpack.c.b16 %v1838, %v1837
    %v2278 = vpack.c.b16 %v1840, %v1839
    %v2279 = vpack.c.b16 %v1842, %v1841
    %v2280 = vpack.c.b16 %v1844, %v1843
    %v2281 = vpack.c.b16 %v1846, %v1845
    %v2282 = vpack.c.b16 %v1848, %v1847
    %v2283 = vpack.c.b16 %v1850, %v1849
    %v2284 = vpack.c.b16 %v1852, %v1851
    %v2285 = vpack.c.b16 %v1854, %v1853
    %v2286 = vpack.c.b16 %v1856, %v1855
    %v2287 = vpack.c.b16 %v1858, %v1857
    %v2288 = vpack.c.b16 %v1860, %v1859
    %v2289 = vpack.c.b16 %v1862, %v1861
    %v2290 = vpack.c.b16 %v1864, %v1863
    %v2291 = vpack.c.b16 %v1866, %v1865
    %v2292 = vpack.c.b16 %v1868, %v1867
    %v2293 = vpack.c.b16 %v1870, %v1869
    %v2294 = vpack.c.b16 %v1872, %v1871
    %v2295 = vpack.c.b16 %v1874, %v1873
    %v2296 = vpack.c.b16 %v1876, %v1875
    %v2297 = vpack.c.b16 %v1878, %v1877
    %v2298 = vpack.c.b16 %v1880, %v1879
    %v2299 = vpack.c.b16 %v1882, %v1881
    %v2300 = vpack.c.b16 %v1884, %v1883
    %v2301 = vpack.c.b16 %v1886, %v1885
    %v2302 = vpack.c.b16 %v1888, %v1887
    %v2303 = vpack.c.b16 %v1890, %v1889
    %v2304 = vpack.c.b16 %v1892, %v1891
    %v2305 = vpack.c.b16 %v1894, %v1893
    %v2306 = vpack.c.b16 %v1896, %v1895
    %v2307 = vpack.c.b16 %v1898, %v1897
    %v2308 = vpack.c.b16 %v1900, %v1899
    %v2309 = vpack.c.b16 %v1902, %v1901
    %v2310 = vpack.c.b16 %v1904, %v1903
    %v2311 = vpack.c.b16 %v1906, %v1905
    %v2312 = vpack.c.b16 %v1908, %v1907
    %v2313 = vpack.c.b16 %v1910, %v1909
    %v2314 = vpack.c.b16 %v1912, %v1911
    %v2315 = vpack.c.b16 %v1914, %v1913
    %v2316 = vpack.c.b16 %v1916, %v1915
    %v2317 = vpack.c.b16 %v1918, %v1917
    %v2318 = vpack.c.b16 %v1920, %v1919
    %v2319 = vpack.c.b16 %v1922, %v1921
    %v2320 = vpack.c.b16 %v1924, %v1923
    %v2321 = vpack.c.b16 %v1926, %v1925
    %v2322 = vpack.c.b16 %v1928, %v1927
    %v2323 = vpack.c.b16 %v1930, %v1929
    %v2324 = vpack.c.b16 %v1932, %v1931
    %v2325 = vpack.c.b16 %v1934, %v1933
    %v2326 = vpack.c.b16 %v1936, %v1935
    %v2327 = vpack.c.b16 %v1938, %v1937
    %v2328 = vpack.c.b16 %v1940, %v1939
    %v2329 = vpack.c.b16 %v1942, %v1941
    %v2330 = vpack.c.b16 %v1944, %v1943
    %v2331 = vpack.c.b16 %v1946, %v1945
    %v2332 = vpack.c.b16 %v1948, %v1947
    %v2333 = vpack.c.b16 %v1950, %v1949
    %v2334 = vpack.c.b16 %v1952, %v1951
    %v2335 = vpack.c.b16 %v1954, %v1953
    %v2336 = vpack.c.b16 %v1956, %v1955
    %v2337 = vpack.c.b16 %v1958, %v1957
    %v2338 = vpack.c.b16 %v1960, %v1959
    %v2339 = vpack.c.b16 %v1962, %v1961
    %v2340 = vpack.c.b16 %v1964, %v1963
    %v2341 = vpack.c.b16 %v1966, %v1965
    %v2342 = vpack.c.b16 %v1968, %v1967
    %v2343 = vpack.c.b16 %v1970, %v1969
    %v2344 = vpack.c.b16 %v1972, %v1971
    %v2345 = vpack.c.b16 %v1974, %v1973
    %v2346 = vpack.c.b16 %v1976, %v1975
    %v2347 = vpack.c.b16 %v1978, %v1977
    %v2348 = vpack.c.b16 %v1980, %v1979
    %v2349 = vpack.c.b16 %v1982, %v1981
    %v2350 = vpack.c.b16 %v1984, %v1983
    %v2351 = vpack.c.b16 %v1986, %v1985
    %v2352 = vpack.c.b16 %v1988, %v1987
    %v2353 = vpack.c.b16 %v1990, %v1989
    %v2354 = vpack.c.b16 %v1992, %v1991
    %v2355 = vpack.c.b16 %v1994, %v1993
    %v2356 = vpack.c.b16 %v1996, %v1995
    %v2357 = vpack.c.b16 %v1998, %v1997
    %v2358 = vpack.c.b16 %v2000, %v1999
    %v2359 = vpack.c.b16 %v2002, %v2001
    %v2360 = vpack.c.b16 %v2004, %v2003
    %v2361 = vpack.c.b16 %v2006, %v2005
    %v2362 = vpack.c.b16 %v2008, %v2007
    %v2363 = vpack.c.b16 %v2010, %v2009
    %v2364 = vpack.c.b16 %v2012, %v2011
    %v2365 = vpack.c.b16 %v2014, %v2013
    %v2366 = vpack.c.b16 %v2016, %v2015
    %v2367 = vpack.c.b16 %v2018, %v2017
    %v2368 = vpack.c.b16 %v2020, %v2019
    %v2369 = vpack.c.b16 %v2022, %v2021
    %v2370 = vpack.c.b16 %v2024, %v2023
    %v2371 = vpack.c.b16 %v2026, %v2025
    %v2372 = vpack.c.b16 %v2028, %v2027
    %v2373 = vpack.c.b16 %v2030, %v2029
    %v2374 = vpack.c.b16 %v2032, %v2031
    %v2375 = vpack.c.b16 %v2034, %v2033
    %v2376 = vpack.c.b16 %v2036, %v2035
    %v2377 = vpack.c.b16 %v2038, %v2037
    %v2378 = vpack.c.b16 %v2040, %v2039
    %v2379 = vpack.c.b16 %v2042, %v2041
    %v2380 = vpack.c.b16 %v2044, %v2043
    %v2381 = vpack.c.b16 %v2046, %v2045
    %v2382 = vpack.c.b16 %v2048, %v2047
    %v2383 = vpack.c.b16 %v2050, %v2049
    %v2384 = vpack.c.b16 %v2052, %v2051
    %v2385 = vpack.c.b16 %v2054, %v2053
    %v2386 = vpack.c.b16 %v2056, %v2055
    %v2387 = vpack.c.b16 %v2058, %v2057
    %v2388 = vpack.c.b16 %v2060, %v2059
    %v2389 = vpack.c.b16 %v2062, %v2061
    %v2390 = vpack.c.b16 %v2064, %v2063
    %v2391 = vpack.c.b16 %v2066, %v2065
    %v2392 = vpack.c.b16 %v2068, %v2067
    %v2393 = vpack.c.b16 %v2070, %v2069
    %v2394 = vpack.c.b16 %v2072, %v2071
    %v2395 = vpack.c.b16 %v2074, %v2073
    %v2396 = vpack.c.b16 %v2076, %v2075
    %v2397 = vpack.c.b16 %v2078, %v2077
    %v2398 = vpack.c.b16 %v2080, %v2079
    %v2399 = vpack.c.b16 %v2082, %v2081
    %v2400 = vpack.c.b16 %v2084, %v2083
    %v2401 = vpack.c.b16 %v2086, %v2085
    %v2402 = vpack.c.b16 %v2088, %v2087
    %v2403 = vpack.c.b16 %v2090, %v2089
    %v2404 = vpack.c.b16 %v2092, %v2091
    %v2405 = vpack.c.b16 %v2094, %v2093
    %v2406 = vpack.c.b16 %v2096, %v2095
    %v2407 = vpack.c.b16 %v2098, %v2097
    %v2408 = vpack.c.b16 %v2100, %v2099
    %v2409 = vpack.c.b16 %v2102, %v2101
    %v2410 = vpack.c.b16 %v2104, %v2103
    %v2411 = vpack.c.b16 %v2106, %v2105
    %v2412 = vpack.c.b16 %v2108, %v2107
    %v2413 = vpack.c.b16 %v2110, %v2109
    %v2414 = vpack.c.b16 %v2112, %v2111
    %v2415 = vpack.c.b16 %v2114, %v2113
    %v2416 = vpack.c.b16 %v2116, %v2115
    %vm2717 = vcmask 523264
    %v2719 = vsel %vm2717, %v309, 0
    %2721 = vmatprep.subr.bf16.mxu0 0
    %2722 = vmatpush1.bf16.msra.mxu0 %v2117
    %2723 = vmatprep.subr.bf16.mxu0 0
    %2724 = vmatpush1.bf16.msra.mxu0 %v2118
    %2725 = vmatprep.subr.bf16.mxu0 0
    %2726 = vmatpush1.bf16.msra.mxu0 %v2119
    %2727 = vmatprep.subr.bf16.mxu0 0
    %2728 = vmatpush1.bf16.msra.mxu0 %v2120
    %2729 = vmatprep.subr.bf16.mxu0 0
    %2730 = vmatpush1.bf16.msra.mxu0 %v2121
    %2731 = vmatprep.subr.bf16.mxu0 0
    %2732 = vmatpush1.bf16.msra.mxu0 %v2122
    %2733 = vmatprep.subr.bf16.mxu0 0
    %2734 = vmatpush1.bf16.msra.mxu0 %v2123
    %2735 = vmatprep.subr.bf16.mxu0 0
    %2736 = vmatpush1.bf16.msra.mxu0 %v2124
    %2737 = vmatprep.subr.bf16.mxu0 0
    %2738 = vmatpush1.bf16.msra.mxu0 %v2125
    %2739 = vmatprep.subr.bf16.mxu0 0
    %2740 = vmatpush1.bf16.msra.mxu0 %v2126
    %2741 = vmatprep.subr.bf16.mxu0 0
    %2742 = vmatpush1.bf16.msra.mxu0 %v2127
    %2743 = vmatprep.subr.bf16.mxu0 0
    %2744 = vmatpush1.bf16.msra.mxu0 %v2128
    %2745 = vmatprep.subr.bf16.mxu0 0
    %2746 = vmatpush1.bf16.msra.mxu0 %v2129
    %2747 = vmatprep.subr.bf16.mxu0 0
    %2748 = vmatpush1.bf16.msra.mxu0 %v2130
    %2749 = vmatprep.subr.bf16.mxu0 0
    %2750 = vmatpush1.bf16.msra.mxu0 %v2131
    %2751 = vmatprep.subr.bf16.mxu0 0
    %2752 = vmatpush1.bf16.msra.mxu0 %v2132
    %2753 = vmatprep.mubr.bf16.mxu0 %v273
    %2754 = vmatmul.mubr.bf16.gmra.mrb[0].mxu0 %v272
    %v2755 = vpop.f32.mrb[0].mxu0
    %v2756 = vadd.f32 %v915, %v2755
    %v2757 = vpop.f32.mrb[0].mxu0
    %v2758 = vpop.f32.mrb[0].mxu0
    %v2759 = vpop.f32.mrb[0].mxu0
    %2760 = vdwg.mxu0
    %2761 = vmatprep.subr.bf16.mxu0 0
    %2762 = vmatpush1.bf16.msra.mxu0 %v2133
    %2763 = vmatprep.subr.bf16.mxu0 0
    %2764 = vmatpush1.bf16.msra.mxu0 %v2134
    %2765 = vmatprep.subr.bf16.mxu0 0
    %2766 = vmatpush1.bf16.msra.mxu0 %v2135
    %2767 = vmatprep.subr.bf16.mxu0 0
    %2768 = vmatpush1.bf16.msra.mxu0 %v2136
    %2769 = vmatprep.subr.bf16.mxu0 0
    %2770 = vmatpush1.bf16.msra.mxu0 %v2137
    %2771 = vmatprep.subr.bf16.mxu0 0
    %2772 = vmatpush1.bf16.msra.mxu0 %v2138
    %2773 = vmatprep.subr.bf16.mxu0 0
    %2774 = vmatpush1.bf16.msra.mxu0 %v2139
    %2775 = vmatprep.subr.bf16.mxu0 0
    %2776 = vmatpush1.bf16.msra.mxu0 %v2140
    %2777 = vmatprep.subr.bf16.mxu0 0
    %2778 = vmatpush1.bf16.msra.mxu0 %v2141
    %2779 = vmatprep.subr.bf16.mxu0 0
    %2780 = vmatpush1.bf16.msra.mxu0 %v2142
    %2781 = vmatprep.subr.bf16.mxu0 0
    %2782 = vmatpush1.bf16.msra.mxu0 %v2143
    %2783 = vmatprep.subr.bf16.mxu0 0
    %2784 = vmatpush1.bf16.msra.mxu0 %v2144
    %2785 = vmatprep.subr.bf16.mxu0 0
    %2786 = vmatpush1.bf16.msra.mxu0 %v2145
    %2787 = vmatprep.subr.bf16.mxu0 0
    %2788 = vmatpush1.bf16.msra.mxu0 %v2146
    %2789 = vmatprep.subr.bf16.mxu0 0
    %2790 = vmatpush1.bf16.msra.mxu0 %v2147
    %2791 = vmatprep.subr.bf16.mxu0 0
    %2792 = vmatpush1.bf16.msra.mxu0 %v2148
    %2793 = vmatprep.mubr.bf16.mxu0 %v275
    %2794 = vmatmul.mubr.bf16.gmra.mrb[0].mxu0 %v274
    %v2795 = vpop.f32.mrb[0].mxu0
    %v2796 = vadd.f32 %v2756, %v2795
    %v2797 = vpop.f32.mrb[0].mxu0
    %v2798 = vpop.f32.mrb[0].mxu0
    %v2799 = vpop.f32.mrb[0].mxu0
    %2800 = vdwg.mxu0
    %2801 = vmatprep.subr.bf16.mxu0 0
    %2802 = vmatpush1.bf16.msra.mxu0 %v2149
    %2803 = vmatprep.subr.bf16.mxu0 0
    %2804 = vmatpush1.bf16.msra.mxu0 %v2150
    %2805 = vmatprep.subr.bf16.mxu0 0
    %2806 = vmatpush1.bf16.msra.mxu0 %v2151
    %2807 = vmatprep.subr.bf16.mxu0 0
    %2808 = vmatpush1.bf16.msra.mxu0 %v2152
    %2809 = vmatprep.subr.bf16.mxu0 0
    %2810 = vmatpush1.bf16.msra.mxu0 %v2153
    %2811 = vmatprep.subr.bf16.mxu0 0
    %2812 = vmatpush1.bf16.msra.mxu0 %v2154
    %2813 = vmatprep.subr.bf16.mxu0 0
    %2814 = vmatpush1.bf16.msra.mxu0 %v2155
    %2815 = vmatprep.subr.bf16.mxu0 0
    %2816 = vmatpush1.bf16.msra.mxu0 %v2156
    %2817 = vmatprep.subr.bf16.mxu0 0
    %2818 = vmatpush1.bf16.msra.mxu0 %v2157
    %2819 = vmatprep.subr.bf16.mxu0 0
    %2820 = vmatpush1.bf16.msra.mxu0 %v2158
    %2821 = vmatprep.subr.bf16.mxu0 0
    %2822 = vmatpush1.bf16.msra.mxu0 %v2159
    %2823 = vmatprep.subr.bf16.mxu0 0
    %2824 = vmatpush1.bf16.msra.mxu0 %v2160
    %2825 = vmatprep.subr.bf16.mxu0 0
    %2826 = vmatpush1.bf16.msra.mxu0 %v2161
    %2827 = vmatprep.subr.bf16.mxu0 0
    %2828 = vmatpush1.bf16.msra.mxu0 %v2162
    %2829 = vmatprep.subr.bf16.mxu0 0
    %2830 = vmatpush1.bf16.msra.mxu0 %v2163
    %2831 = vmatprep.subr.bf16.mxu0 0
    %2832 = vmatpush1.bf16.msra.mxu0 %v2164
    %2833 = vmatprep.mubr.bf16.mxu0 %v277
    %2834 = vmatmul.mubr.bf16.gmra.mrb[0].mxu0 %v276
    %v2835 = vpop.f32.mrb[0].mxu0
    %v2836 = vadd.f32 %v2796, %v2835
    %v2837 = vpop.f32.mrb[0].mxu0
    %v2838 = vpop.f32.mrb[0].mxu0
    %v2839 = vpop.f32.mrb[0].mxu0
    %2840 = vdwg.mxu0
    %2841 = vmatprep.subr.bf16.mxu0 0
    %2842 = vmatpush1.bf16.msra.mxu0 %v2165
    %2843 = vmatprep.subr.bf16.mxu0 0
    %2844 = vmatpush1.bf16.msra.mxu0 %v2166
    %2845 = vmatprep.subr.bf16.mxu0 0
    %2846 = vmatpush1.bf16.msra.mxu0 %v2167
    %2847 = vmatprep.subr.bf16.mxu0 0
    %2848 = vmatpush1.bf16.msra.mxu0 %v2168
    %2849 = vmatprep.subr.bf16.mxu0 0
    %2850 = vmatpush1.bf16.msra.mxu0 %v2169
    %2851 = vmatprep.subr.bf16.mxu0 0
    %2852 = vmatpush1.bf16.msra.mxu0 %v2170
    %2853 = vmatprep.subr.bf16.mxu0 0
    %2854 = vmatpush1.bf16.msra.mxu0 %v2171
    %2855 = vmatprep.subr.bf16.mxu0 0
    %2856 = vmatpush1.bf16.msra.mxu0 %v2172
    %2857 = vmatprep.subr.bf16.mxu0 0
    %2858 = vmatpush1.bf16.msra.mxu0 %v2173
    %2859 = vmatprep.subr.bf16.mxu0 0
    %2860 = vmatpush1.bf16.msra.mxu0 %v2174
    %2861 = vmatprep.subr.bf16.mxu0 0
    %2862 = vmatpush1.bf16.msra.mxu0 %v2175
    %2863 = vmatprep.subr.bf16.mxu0 0
    %2864 = vmatpush1.bf16.msra.mxu0 %v2176
    %2865 = vmatprep.subr.bf16.mxu0 0
    %2866 = vmatpush1.bf16.msra.mxu0 %v2177
    %2867 = vmatprep.subr.bf16.mxu0 0
    %2868 = vmatpush1.bf16.msra.mxu0 %v2178
    %2869 = vmatprep.subr.bf16.mxu0 0
    %2870 = vmatpush1.bf16.msra.mxu0 %v2179
    %2871 = vmatprep.subr.bf16.mxu0 0
    %2872 = vmatpush1.bf16.msra.mxu0 %v2180
    %2873 = vmatprep.mubr.bf16.mxu0 %v279
    %2874 = vmatmul.mubr.bf16.gmra.mrb[0].mxu0 %v278
    %v2875 = vpop.f32.mrb[0].mxu0
    %v2876 = vadd.f32 %v2836, %v2875
    %v2877 = vpop.f32.mrb[0].mxu0
    %v2878 = vpop.f32.mrb[0].mxu0
    %v2879 = vpop.f32.mrb[0].mxu0
    %2880 = vdwg.mxu0
    %2881 = vmatprep.subr.bf16.mxu0 0
    %2882 = vmatpush1.bf16.msra.mxu0 %v2181
    %2883 = vmatprep.subr.bf16.mxu0 0
    %2884 = vmatpush1.bf16.msra.mxu0 %v2182
    %2885 = vmatprep.subr.bf16.mxu0 0
    %2886 = vmatpush1.bf16.msra.mxu0 %v2183
    %2887 = vmatprep.subr.bf16.mxu0 0
    %2888 = vmatpush1.bf16.msra.mxu0 %v2184
    %2889 = vmatprep.subr.bf16.mxu0 0
    %2890 = vmatpush1.bf16.msra.mxu0 %v2185
    %2891 = vmatprep.subr.bf16.mxu0 0
    %2892 = vmatpush1.bf16.msra.mxu0 %v2186
    %2893 = vmatprep.subr.bf16.mxu0 0
    %2894 = vmatpush1.bf16.msra.mxu0 %v2187
    %2895 = vmatprep.subr.bf16.mxu0 0
    %2896 = vmatpush1.bf16.msra.mxu0 %v2188
    %2897 = vmatprep.subr.bf16.mxu0 0
    %2898 = vmatpush1.bf16.msra.mxu0 %v2189
    %2899 = vmatprep.subr.bf16.mxu0 0
    %2900 = vmatpush1.bf16.msra.mxu0 %v2190
    %2901 = vmatprep.subr.bf16.mxu0 0
    %2902 = vmatpush1.bf16.msra.mxu0 %v2191
    %2903 = vmatprep.subr.bf16.mxu0 0
    %2904 = vmatpush1.bf16.msra.mxu0 %v2192
    %2905 = vmatprep.subr.bf16.mxu0 0
    %2906 = vmatpush1.bf16.msra.mxu0 %v2193
    %2907 = vmatprep.subr.bf16.mxu0 0
    %2908 = vmatpush1.bf16.msra.mxu0 %v2194
    %2909 = vmatprep.subr.bf16.mxu0 0
    %2910 = vmatpush1.bf16.msra.mxu0 %v2195
    %2911 = vmatprep.subr.bf16.mxu0 0
    %2912 = vmatpush1.bf16.msra.mxu0 %v2196
    %2913 = vmatprep.mubr.bf16.mxu0 %v281
    %2914 = vmatmul.mubr.bf16.gmra.mrb[0].mxu0 %v280
    %v2915 = vpop.f32.mrb[0].mxu0
    %v2916 = vadd.f32 %v2876, %v2915
    %v2917 = vpop.f32.mrb[0].mxu0
    %v2918 = vpop.f32.mrb[0].mxu0
    %v2919 = vpop.f32.mrb[0].mxu0
    %2920 = vdwg.mxu0
    %2921 = vmatprep.subr.bf16.mxu0 0
    %2922 = vmatpush1.bf16.msra.mxu0 %v2197
    %2923 = vmatprep.subr.bf16.mxu0 0
    %2924 = vmatpush1.bf16.msra.mxu0 %v2198
    %2925 = vmatprep.subr.bf16.mxu0 0
    %2926 = vmatpush1.bf16.msra.mxu0 %v2199
    %2927 = vmatprep.subr.bf16.mxu0 0
    %2928 = vmatpush1.bf16.msra.mxu0 %v2200
    %2929 = vmatprep.subr.bf16.mxu0 0
    %2930 = vmatpush1.bf16.msra.mxu0 %v2201
    %2931 = vmatprep.subr.bf16.mxu0 0
    %2932 = vmatpush1.bf16.msra.mxu0 %v2202
    %2933 = vmatprep.subr.bf16.mxu0 0
    %2934 = vmatpush1.bf16.msra.mxu0 %v2203
    %2935 = vmatprep.subr.bf16.mxu0 0
    %2936 = vmatpush1.bf16.msra.mxu0 %v2204
    %2937 = vmatprep.subr.bf16.mxu0 0
    %2938 = vmatpush1.bf16.msra.mxu0 %v2205
    %2939 = vmatprep.subr.bf16.mxu0 0
    %2940 = vmatpush1.bf16.msra.mxu0 %v2206
    %2941 = vmatprep.subr.bf16.mxu0 0
    %2942 = vmatpush1.bf16.msra.mxu0 %v2207
    %2943 = vmatprep.subr.bf16.mxu0 0
    %2944 = vmatpush1.bf16.msra.mxu0 %v2208
    %2945 = vmatprep.subr.bf16.mxu0 0
    %2946 = vmatpush1.bf16.msra.mxu0 %v2209
    %2947 = vmatprep.subr.bf16.mxu0 0
    %2948 = vmatpush1.bf16.msra.mxu0 %v2210
    %2949 = vmatprep.subr.bf16.mxu0 0
    %2950 = vmatpush1.bf16.msra.mxu0 %v2211
    %2951 = vmatprep.subr.bf16.mxu0 0
    %2952 = vmatpush1.bf16.msra.mxu0 %v2212
    %2953 = vmatprep.mubr.bf16.mxu0 %v283
    %2954 = vmatmul.mubr.bf16.gmra.mrb[0].mxu0 %v282
    %v2955 = vpop.f32.mrb[0].mxu0
    %v2956 = vadd.f32 %v2916, %v2955
    %v2957 = vpop.f32.mrb[0].mxu0
    %v2958 = vpop.f32.mrb[0].mxu0
    %v2959 = vpop.f32.mrb[0].mxu0
    %2960 = vdwg.mxu0
    %2961 = vmatprep.subr.bf16.mxu0 0
    %2962 = vmatpush1.bf16.msra.mxu0 %v2213
    %2963 = vmatprep.subr.bf16.mxu0 0
    %2964 = vmatpush1.bf16.msra.mxu0 %v2214
    %2965 = vmatprep.subr.bf16.mxu0 0
    %2966 = vmatpush1.bf16.msra.mxu0 %v2215
    %2967 = vmatprep.subr.bf16.mxu0 0
    %2968 = vmatpush1.bf16.msra.mxu0 %v2216
    %2969 = vmatprep.subr.bf16.mxu0 0
    %2970 = vmatpush1.bf16.msra.mxu0 %v2217
    %2971 = vmatprep.subr.bf16.mxu0 0
    %2972 = vmatpush1.bf16.msra.mxu0 %v2218
    %2973 = vmatprep.subr.bf16.mxu0 0
    %2974 = vmatpush1.bf16.msra.mxu0 %v2219
    %2975 = vmatprep.subr.bf16.mxu0 0
    %2976 = vmatpush1.bf16.msra.mxu0 %v2220
    %2977 = vmatprep.subr.bf16.mxu0 0
    %2978 = vmatpush1.bf16.msra.mxu0 %v2221
    %2979 = vmatprep.subr.bf16.mxu0 0
    %2980 = vmatpush1.bf16.msra.mxu0 %v2222
    %2981 = vmatprep.subr.bf16.mxu0 0
    %2982 = vmatpush1.bf16.msra.mxu0 %v2223
    %2983 = vmatprep.subr.bf16.mxu0 0
    %2984 = vmatpush1.bf16.msra.mxu0 %v2224
    %2985 = vmatprep.subr.bf16.mxu0 0
    %2986 = vmatpush1.bf16.msra.mxu0 %v2225
    %2987 = vmatprep.subr.bf16.mxu0 0
    %2988 = vmatpush1.bf16.msra.mxu0 %v2226
    %2989 = vmatprep.subr.bf16.mxu0 0
    %2990 = vmatpush1.bf16.msra.mxu0 %v2227
    %2991 = vmatprep.subr.bf16.mxu0 0
    %2992 = vmatpush1.bf16.msra.mxu0 %v2228
    %2993 = vmatprep.mubr.bf16.mxu0 %v285
    %2994 = vmatmul.mubr.bf16.gmra.mrb[0].mxu0 %v284
    %v2995 = vpop.f32.mrb[0].mxu0
    %v2996 = vadd.f32 %v2956, %v2995
    %v2997 = vpop.f32.mrb[0].mxu0
    %v2998 = vpop.f32.mrb[0].mxu0
    %v2999 = vpop.f32.mrb[0].mxu0
    %3000 = vdwg.mxu0
    %3001 = vmatprep.subr.bf16.mxu0 0
    %3002 = vmatpush1.bf16.msra.mxu0 %v2229
    %3003 = vmatprep.subr.bf16.mxu0 0
    %3004 = vmatpush1.bf16.msra.mxu0 %v2230
    %3005 = vmatprep.subr.bf16.mxu0 0
    %3006 = vmatpush1.bf16.msra.mxu0 %v2231
    %3007 = vmatprep.subr.bf16.mxu0 0
    %3008 = vmatpush1.bf16.msra.mxu0 %v2232
    %3009 = vmatprep.subr.bf16.mxu0 0
    %3010 = vmatpush1.bf16.msra.mxu0 %v2233
    %3011 = vmatprep.subr.bf16.mxu0 0
    %3012 = vmatpush1.bf16.msra.mxu0 %v2234
    %3013 = vmatprep.subr.bf16.mxu0 0
    %3014 = vmatpush1.bf16.msra.mxu0 %v2235
    %3015 = vmatprep.subr.bf16.mxu0 0
    %3016 = vmatpush1.bf16.msra.mxu0 %v2236
    %3017 = vmatprep.subr.bf16.mxu0 0
    %3018 = vmatpush1.bf16.msra.mxu0 %v2237
    %3019 = vmatprep.subr.bf16.mxu0 0
    %3020 = vmatpush1.bf16.msra.mxu0 %v2238
    %3021 = vmatprep.subr.bf16.mxu0 0
    %3022 = vmatpush1.bf16.msra.mxu0 %v2239
    %3023 = vmatprep.subr.bf16.mxu0 0
    %3024 = vmatpush1.bf16.msra.mxu0 %v2240
    %3025 = vmatprep.subr.bf16.mxu0 0
    %3026 = vmatpush1.bf16.msra.mxu0 %v2241
    %3027 = vmatprep.subr.bf16.mxu0 0
    %3028 = vmatpush1.bf16.msra.mxu0 %v2242
    %3029 = vmatprep.subr.bf16.mxu0 0
    %3030 = vmatpush1.bf16.msra.mxu0 %v2243
    %3031 = vmatprep.subr.bf16.mxu0 0
    %3032 = vmatpush1.bf16.msra.mxu0 %v2244
    %3033 = vmatprep.mubr.bf16.mxu0 %v287
    %3034 = vmatmul.mubr.bf16.gmra.mrb[0].mxu0 %v286
    %v3035 = vpop.f32.mrb[0].mxu0
    %v3036 = vadd.f32 %v2996, %v3035
    %v3037 = vpop.f32.mrb[0].mxu0
    %v3038 = vpop.f32.mrb[0].mxu0
    %v3039 = vpop.f32.mrb[0].mxu0
    %3040 = vdwg.mxu0
    %3041 = vmatprep.subr.bf16.mxu0 0
    %3042 = vmatpush1.bf16.msra.mxu0 %v2245
    %3043 = vmatprep.subr.bf16.mxu0 0
    %3044 = vmatpush1.bf16.msra.mxu0 %v2246
    %3045 = vmatprep.subr.bf16.mxu0 0
    %3046 = vmatpush1.bf16.msra.mxu0 %v2247
    %3047 = vmatprep.subr.bf16.mxu0 0
    %3048 = vmatpush1.bf16.msra.mxu0 %v2248
    %3049 = vmatprep.subr.bf16.mxu0 0
    %3050 = vmatpush1.bf16.msra.mxu0 %v2249
    %3051 = vmatprep.subr.bf16.mxu0 0
    %3052 = vmatpush1.bf16.msra.mxu0 %v2250
    %3053 = vmatprep.subr.bf16.mxu0 0
    %3054 = vmatpush1.bf16.msra.mxu0 %v2251
    %3055 = vmatprep.subr.bf16.mxu0 0
    %3056 = vmatpush1.bf16.msra.mxu0 %v2252
    %3057 = vmatprep.subr.bf16.mxu0 0
    %3058 = vmatpush1.bf16.msra.mxu0 %v2253
    %3059 = vmatprep.subr.bf16.mxu0 0
    %3060 = vmatpush1.bf16.msra.mxu0 %v2254
    %3061 = vmatprep.subr.bf16.mxu0 0
    %3062 = vmatpush1.bf16.msra.mxu0 %v2255
    %3063 = vmatprep.subr.bf16.mxu0 0
    %3064 = vmatpush1.bf16.msra.mxu0 %v2256
    %3065 = vmatprep.subr.bf16.mxu0 0
    %3066 = vmatpush1.bf16.msra.mxu0 %v2257
    %3067 = vmatprep.subr.bf16.mxu0 0
    %3068 = vmatpush1.bf16.msra.mxu0 %v2258
    %3069 = vmatprep.subr.bf16.mxu0 0
    %3070 = vmatpush1.bf16.msra.mxu0 %v2259
    %3071 = vmatprep.subr.bf16.mxu0 0
    %3072 = vmatpush1.bf16.msra.mxu0 %v2260
    %3073 = vmatprep.mubr.bf16.mxu0 %v289
    %3074 = vmatmul.mubr.bf16.gmra.mrb[0].mxu0 %v288
    %v3075 = vpop.f32.mrb[0].mxu0
    %v3076 = vadd.f32 %v3036, %v3075
    %v3077 = vpop.f32.mrb[0].mxu0
    %v3078 = vpop.f32.mrb[0].mxu0
    %v3079 = vpop.f32.mrb[0].mxu0
    %3080 = vdwg.mxu0
    %3081 = vmatprep.subr.bf16.mxu0 0
    %3082 = vmatpush1.bf16.msra.mxu0 %v2261
    %3083 = vmatprep.subr.bf16.mxu0 0
    %3084 = vmatpush1.bf16.msra.mxu0 %v2262
    %3085 = vmatprep.subr.bf16.mxu0 0
    %3086 = vmatpush1.bf16.msra.mxu0 %v2263
    %3087 = vmatprep.subr.bf16.mxu0 0
    %3088 = vmatpush1.bf16.msra.mxu0 %v2264
    %3089 = vmatprep.subr.bf16.mxu0 0
    %3090 = vmatpush1.bf16.msra.mxu0 %v2265
    %3091 = vmatprep.subr.bf16.mxu0 0
    %3092 = vmatpush1.bf16.msra.mxu0 %v2266
    %3093 = vmatprep.subr.bf16.mxu0 0
    %3094 = vmatpush1.bf16.msra.mxu0 %v2267
    %3095 = vmatprep.subr.bf16.mxu0 0
    %3096 = vmatpush1.bf16.msra.mxu0 %v2268
    %3097 = vmatprep.subr.bf16.mxu0 0
    %3098 = vmatpush1.bf16.msra.mxu0 %v2269
    %3099 = vmatprep.subr.bf16.mxu0 0
    %3100 = vmatpush1.bf16.msra.mxu0 %v2270
    %3101 = vmatprep.subr.bf16.mxu0 0
    %3102 = vmatpush1.bf16.msra.mxu0 %v2271
    %3103 = vmatprep.subr.bf16.mxu0 0
    %3104 = vmatpush1.bf16.msra.mxu0 %v2272
    %3105 = vmatprep.subr.bf16.mxu0 0
    %3106 = vmatpush1.bf16.msra.mxu0 %v2273
    %3107 = vmatprep.subr.bf16.mxu0 0
    %3108 = vmatpush1.bf16.msra.mxu0 %v2274
    %3109 = vmatprep.subr.bf16.mxu0 0
    %3110 = vmatpush1.bf16.msra.mxu0 %v2275
    %3111 = vmatprep.subr.bf16.mxu0 0
    %3112 = vmatpush1.bf16.msra.mxu0 %v2276
    %3113 = vmatprep.mubr.bf16.mxu0 %v291
    %3114 = vmatmul.mubr.bf16.gmra.mrb[0].mxu0 %v290
    %v3115 = vpop.f32.mrb[0].mxu0
    %v3116 = vadd.f32 %v3076, %v3115
    %v3117 = vpop.f32.mrb[0].mxu0
    %v3118 = vpop.f32.mrb[0].mxu0
    %v3119 = vpop.f32.mrb[0].mxu0
    %3120 = vdwg.mxu0
    %3121 = vmatprep.subr.bf16.mxu0 0
    %3122 = vmatpush1.bf16.msra.mxu0 %v2277
    %3123 = vmatprep.subr.bf16.mxu0 0
    %3124 = vmatpush1.bf16.msra.mxu0 %v2278
    %3125 = vmatprep.subr.bf16.mxu0 0
    %3126 = vmatpush1.bf16.msra.mxu0 %v2279
    %3127 = vmatprep.subr.bf16.mxu0 0
    %3128 = vmatpush1.bf16.msra.mxu0 %v2280
    %3129 = vmatprep.subr.bf16.mxu0 0
    %3130 = vmatpush1.bf16.msra.mxu0 %v2281
    %3131 = vmatprep.subr.bf16.mxu0 0
    %3132 = vmatpush1.bf16.msra.mxu0 %v2282
    %3133 = vmatprep.subr.bf16.mxu0 0
    %3134 = vmatpush1.bf16.msra.mxu0 %v2283
    %3135 = vmatprep.subr.bf16.mxu0 0
    %3136 = vmatpush1.bf16.msra.mxu0 %v2284
    %3137 = vmatprep.subr.bf16.mxu0 0
    %3138 = vmatpush1.bf16.msra.mxu0 %v2285
    %3139 = vmatprep.subr.bf16.mxu0 0
    %3140 = vmatpush1.bf16.msra.mxu0 %v2286
    %3141 = vmatprep.subr.bf16.mxu0 0
    %3142 = vmatpush1.bf16.msra.mxu0 %v2287
    %3143 = vmatprep.subr.bf16.mxu0 0
    %3144 = vmatpush1.bf16.msra.mxu0 %v2288
    %3145 = vmatprep.subr.bf16.mxu0 0
    %3146 = vmatpush1.bf16.msra.mxu0 %v2289
    %3147 = vmatprep.subr.bf16.mxu0 0
    %3148 = vmatpush1.bf16.msra.mxu0 %v2290
    %3149 = vmatprep.subr.bf16.mxu0 0
    %3150 = vmatpush1.bf16.msra.mxu0 %v2291
    %3151 = vmatprep.subr.bf16.mxu0 0
    %3152 = vmatpush1.bf16.msra.mxu0 %v2292
    %3153 = vmatprep.mubr.bf16.mxu0 %v293
    %3154 = vmatmul.mubr.bf16.gmra.mrb[0].mxu0 %v292
    %v3155 = vpop.f32.mrb[0].mxu0
    %v3156 = vadd.f32 %v3116, %v3155
    %v3157 = vpop.f32.mrb[0].mxu0
    %v3158 = vpop.f32.mrb[0].mxu0
    %v3159 = vpop.f32.mrb[0].mxu0
    %3160 = vdwg.mxu0
    %3161 = vmatprep.subr.bf16.mxu0 0
    %3162 = vmatpush1.bf16.msra.mxu0 %v2293
    %3163 = vmatprep.subr.bf16.mxu0 0
    %3164 = vmatpush1.bf16.msra.mxu0 %v2294
    %3165 = vmatprep.subr.bf16.mxu0 0
    %3166 = vmatpush1.bf16.msra.mxu0 %v2295
    %3167 = vmatprep.subr.bf16.mxu0 0
    %3168 = vmatpush1.bf16.msra.mxu0 %v2296
    %3169 = vmatprep.subr.bf16.mxu0 0
    %3170 = vmatpush1.bf16.msra.mxu0 %v2297
    %3171 = vmatprep.subr.bf16.mxu0 0
    %3172 = vmatpush1.bf16.msra.mxu0 %v2298
    %3173 = vmatprep.subr.bf16.mxu0 0
    %3174 = vmatpush1.bf16.msra.mxu0 %v2299
    %3175 = vmatprep.subr.bf16.mxu0 0
    %3176 = vmatpush1.bf16.msra.mxu0 %v2300
    %3177 = vmatprep.subr.bf16.mxu0 0
    %3178 = vmatpush1.bf16.msra.mxu0 %v2301
    %3179 = vmatprep.subr.bf16.mxu0 0
    %3180 = vmatpush1.bf16.msra.mxu0 %v2302
    %3181 = vmatprep.subr.bf16.mxu0 0
    %3182 = vmatpush1.bf16.msra.mxu0 %v2303
    %3183 = vmatprep.subr.bf16.mxu0 0
    %3184 = vmatpush1.bf16.msra.mxu0 %v2304
    %3185 = vmatprep.subr.bf16.mxu0 0
    %3186 = vmatpush1.bf16.msra.mxu0 %v2305
    %3187 = vmatprep.subr.bf16.mxu0 0
    %3188 = vmatpush1.bf16.msra.mxu0 %v2306
    %3189 = vmatprep.subr.bf16.mxu0 0
    %3190 = vmatpush1.bf16.msra.mxu0 %v2307
    %3191 = vmatprep.subr.bf16.mxu0 0
    %3192 = vmatpush1.bf16.msra.mxu0 %v2308
    %3193 = vmatprep.mubr.bf16.mxu0 %v295
    %3194 = vmatmul.mubr.bf16.gmra.mrb[0].mxu0 %v294
    %v3195 = vpop.f32.mrb[0].mxu0
    %v3196 = vadd.f32 %v3156, %v3195
    %v3197 = vpop.f32.mrb[0].mxu0
    %v3198 = vpop.f32.mrb[0].mxu0
    %v3199 = vpop.f32.mrb[0].mxu0
    %3200 = vdwg.mxu0
    %3201 = vmatprep.subr.bf16.mxu0 0
    %3202 = vmatpush1.bf16.msra.mxu0 %v2309
    %3203 = vmatprep.subr.bf16.mxu0 0
    %3204 = vmatpush1.bf16.msra.mxu0 %v2310
    %3205 = vmatprep.subr.bf16.mxu0 0
    %3206 = vmatpush1.bf16.msra.mxu0 %v2311
    %3207 = vmatprep.subr.bf16.mxu0 0
    %3208 = vmatpush1.bf16.msra.mxu0 %v2312
    %3209 = vmatprep.subr.bf16.mxu0 0
    %3210 = vmatpush1.bf16.msra.mxu0 %v2313
    %3211 = vmatprep.subr.bf16.mxu0 0
    %3212 = vmatpush1.bf16.msra.mxu0 %v2314
    %3213 = vmatprep.subr.bf16.mxu0 0
    %3214 = vmatpush1.bf16.msra.mxu0 %v2315
    %3215 = vmatprep.subr.bf16.mxu0 0
    %3216 = vmatpush1.bf16.msra.mxu0 %v2316
    %3217 = vmatprep.subr.bf16.mxu0 0
    %3218 = vmatpush1.bf16.msra.mxu0 %v2317
    %3219 = vmatprep.subr.bf16.mxu0 0
    %3220 = vmatpush1.bf16.msra.mxu0 %v2318
    %3221 = vmatprep.subr.bf16.mxu0 0
    %3222 = vmatpush1.bf16.msra.mxu0 %v2319
    %3223 = vmatprep.subr.bf16.mxu0 0
    %3224 = vmatpush1.bf16.msra.mxu0 %v2320
    %3225 = vmatprep.subr.bf16.mxu0 0
    %3226 = vmatpush1.bf16.msra.mxu0 %v2321
    %3227 = vmatprep.subr.bf16.mxu0 0
    %3228 = vmatpush1.bf16.msra.mxu0 %v2322
    %3229 = vmatprep.subr.bf16.mxu0 0
    %3230 = vmatpush1.bf16.msra.mxu0 %v2323
    %3231 = vmatprep.subr.bf16.mxu0 0
    %3232 = vmatpush1.bf16.msra.mxu0 %v2324
    %3233 = vmatprep.mubr.bf16.mxu0 %v297
    %3234 = vmatmul.mubr.bf16.gmra.mrb[0].mxu0 %v296
    %v3235 = vpop.f32.mrb[0].mxu0
    %v3236 = vadd.f32 %v3196, %v3235
    %v3237 = vpop.f32.mrb[0].mxu0
    %v3238 = vpop.f32.mrb[0].mxu0
    %v3239 = vpop.f32.mrb[0].mxu0
    %3240 = vdwg.mxu0
    %3241 = vmatprep.subr.bf16.mxu0 0
    %3242 = vmatpush1.bf16.msra.mxu0 %v2325
    %3243 = vmatprep.subr.bf16.mxu0 0
    %3244 = vmatpush1.bf16.msra.mxu0 %v2326
    %3245 = vmatprep.subr.bf16.mxu0 0
    %3246 = vmatpush1.bf16.msra.mxu0 %v2327
    %3247 = vmatprep.subr.bf16.mxu0 0
    %3248 = vmatpush1.bf16.msra.mxu0 %v2328
    %3249 = vmatprep.subr.bf16.mxu0 0
    %3250 = vmatpush1.bf16.msra.mxu0 %v2329
    %3251 = vmatprep.subr.bf16.mxu0 0
    %3252 = vmatpush1.bf16.msra.mxu0 %v2330
    %3253 = vmatprep.subr.bf16.mxu0 0
    %3254 = vmatpush1.bf16.msra.mxu0 %v2331
    %3255 = vmatprep.subr.bf16.mxu0 0
    %3256 = vmatpush1.bf16.msra.mxu0 %v2332
    %3257 = vmatprep.subr.bf16.mxu0 0
    %3258 = vmatpush1.bf16.msra.mxu0 %v2333
    %3259 = vmatprep.subr.bf16.mxu0 0
    %3260 = vmatpush1.bf16.msra.mxu0 %v2334
    %3261 = vmatprep.subr.bf16.mxu0 0
    %3262 = vmatpush1.bf16.msra.mxu0 %v2335
    %3263 = vmatprep.subr.bf16.mxu0 0
    %3264 = vmatpush1.bf16.msra.mxu0 %v2336
    %3265 = vmatprep.subr.bf16.mxu0 0
    %3266 = vmatpush1.bf16.msra.mxu0 %v2337
    %3267 = vmatprep.subr.bf16.mxu0 0
    %3268 = vmatpush1.bf16.msra.mxu0 %v2338
    %3269 = vmatprep.subr.bf16.mxu0 0
    %3270 = vmatpush1.bf16.msra.mxu0 %v2339
    %3271 = vmatprep.subr.bf16.mxu0 0
    %3272 = vmatpush1.bf16.msra.mxu0 %v2340
    %3273 = vmatprep.mubr.bf16.mxu0 %v299
    %3274 = vmatmul.mubr.bf16.gmra.mrb[0].mxu0 %v298
    %v3275 = vpop.f32.mrb[0].mxu0
    %v3276 = vadd.f32 %v3236, %v3275
    %v3277 = vpop.f32.mrb[0].mxu0
    %v3278 = vpop.f32.mrb[0].mxu0
    %v3279 = vpop.f32.mrb[0].mxu0
    %3280 = vdwg.mxu0
    %3281 = vmatprep.subr.bf16.mxu0 0
    %3282 = vmatpush1.bf16.msra.mxu0 %v2341
    %3283 = vmatprep.subr.bf16.mxu0 0
    %3284 = vmatpush1.bf16.msra.mxu0 %v2342
    %3285 = vmatprep.subr.bf16.mxu0 0
    %3286 = vmatpush1.bf16.msra.mxu0 %v2343
    %3287 = vmatprep.subr.bf16.mxu0 0
    %3288 = vmatpush1.bf16.msra.mxu0 %v2344
    %3289 = vmatprep.subr.bf16.mxu0 0
    %3290 = vmatpush1.bf16.msra.mxu0 %v2345
    %3291 = vmatprep.subr.bf16.mxu0 0
    %3292 = vmatpush1.bf16.msra.mxu0 %v2346
    %3293 = vmatprep.subr.bf16.mxu0 0
    %3294 = vmatpush1.bf16.msra.mxu0 %v2347
    %3295 = vmatprep.subr.bf16.mxu0 0
    %3296 = vmatpush1.bf16.msra.mxu0 %v2348
    %3297 = vmatprep.subr.bf16.mxu0 0
    %3298 = vmatpush1.bf16.msra.mxu0 %v2349
    %3299 = vmatprep.subr.bf16.mxu0 0
    %3300 = vmatpush1.bf16.msra.mxu0 %v2350
    %3301 = vmatprep.subr.bf16.mxu0 0
    %3302 = vmatpush1.bf16.msra.mxu0 %v2351
    %3303 = vmatprep.subr.bf16.mxu0 0
    %3304 = vmatpush1.bf16.msra.mxu0 %v2352
    %3305 = vmatprep.subr.bf16.mxu0 0
    %3306 = vmatpush1.bf16.msra.mxu0 %v2353
    %3307 = vmatprep.subr.bf16.mxu0 0
    %3308 = vmatpush1.bf16.msra.mxu0 %v2354
    %3309 = vmatprep.subr.bf16.mxu0 0
    %3310 = vmatpush1.bf16.msra.mxu0 %v2355
    %3311 = vmatprep.subr.bf16.mxu0 0
    %3312 = vmatpush1.bf16.msra.mxu0 %v2356
    %3313 = vmatprep.mubr.bf16.mxu0 %v301
    %3314 = vmatmul.mubr.bf16.gmra.mrb[0].mxu0 %v300
    %v3315 = vpop.f32.mrb[0].mxu0
    %v3316 = vadd.f32 %v3276, %v3315
    %v3317 = vpop.f32.mrb[0].mxu0
    %v3318 = vpop.f32.mrb[0].mxu0
    %v3319 = vpop.f32.mrb[0].mxu0
    %3320 = vdwg.mxu0
    %3321 = vmatprep.subr.bf16.mxu0 0
    %3322 = vmatpush1.bf16.msra.mxu0 %v2357
    %3323 = vmatprep.subr.bf16.mxu0 0
    %3324 = vmatpush1.bf16.msra.mxu0 %v2358
    %3325 = vmatprep.subr.bf16.mxu0 0
    %3326 = vmatpush1.bf16.msra.mxu0 %v2359
    %3327 = vmatprep.subr.bf16.mxu0 0
    %3328 = vmatpush1.bf16.msra.mxu0 %v2360
    %3329 = vmatprep.subr.bf16.mxu0 0
    %3330 = vmatpush1.bf16.msra.mxu0 %v2361
    %3331 = vmatprep.subr.bf16.mxu0 0
    %3332 = vmatpush1.bf16.msra.mxu0 %v2362
    %3333 = vmatprep.subr.bf16.mxu0 0
    %3334 = vmatpush1.bf16.msra.mxu0 %v2363
    %3335 = vmatprep.subr.bf16.mxu0 0
    %3336 = vmatpush1.bf16.msra.mxu0 %v2364
    %3337 = vmatprep.subr.bf16.mxu0 0
    %3338 = vmatpush1.bf16.msra.mxu0 %v2365
    %3339 = vmatprep.subr.bf16.mxu0 0
    %3340 = vmatpush1.bf16.msra.mxu0 %v2366
    %3341 = vmatprep.subr.bf16.mxu0 0
    %3342 = vmatpush1.bf16.msra.mxu0 %v2367
    %3343 = vmatprep.subr.bf16.mxu0 0
    %3344 = vmatpush1.bf16.msra.mxu0 %v2368
    %3345 = vmatprep.subr.bf16.mxu0 0
    %3346 = vmatpush1.bf16.msra.mxu0 %v2369
    %3347 = vmatprep.subr.bf16.mxu0 0
    %3348 = vmatpush1.bf16.msra.mxu0 %v2370
    %3349 = vmatprep.subr.bf16.mxu0 0
    %3350 = vmatpush1.bf16.msra.mxu0 %v2371
    %3351 = vmatprep.subr.bf16.mxu0 0
    %3352 = vmatpush1.bf16.msra.mxu0 %v2372
    %3353 = vmatprep.mubr.bf16.mxu0 %v303
    %3354 = vmatmul.mubr.bf16.gmra.mrb[0].mxu0 %v302
    %v3355 = vpop.f32.mrb[0].mxu0
    %v3356 = vadd.f32 %v3316, %v3355
    %v3357 = vpop.f32.mrb[0].mxu0
    %v3358 = vpop.f32.mrb[0].mxu0
    %v3359 = vpop.f32.mrb[0].mxu0
    %3360 = vdwg.mxu0
    %3361 = vmatprep.subr.bf16.mxu0 0
    %3362 = vmatpush1.bf16.msra.mxu0 %v2373
    %3363 = vmatprep.subr.bf16.mxu0 0
    %3364 = vmatpush1.bf16.msra.mxu0 %v2374
    %3365 = vmatprep.subr.bf16.mxu0 0
    %3366 = vmatpush1.bf16.msra.mxu0 %v2375
    %3367 = vmatprep.subr.bf16.mxu0 0
    %3368 = vmatpush1.bf16.msra.mxu0 %v2376
    %3369 = vmatprep.subr.bf16.mxu0 0
    %3370 = vmatpush1.bf16.msra.mxu0 %v2377
    %3371 = vmatprep.subr.bf16.mxu0 0
    %3372 = vmatpush1.bf16.msra.mxu0 %v2378
    %3373 = vmatprep.subr.bf16.mxu0 0
    %3374 = vmatpush1.bf16.msra.mxu0 %v2379
    %3375 = vmatprep.subr.bf16.mxu0 0
    %3376 = vmatpush1.bf16.msra.mxu0 %v2380
    %3377 = vmatprep.subr.bf16.mxu0 0
    %3378 = vmatpush1.bf16.msra.mxu0 %v2381
    %3379 = vmatprep.subr.bf16.mxu0 0
    %3380 = vmatpush1.bf16.msra.mxu0 %v2382
    %3381 = vmatprep.subr.bf16.mxu0 0
    %3382 = vmatpush1.bf16.msra.mxu0 %v2383
    %3383 = vmatprep.subr.bf16.mxu0 0
    %3384 = vmatpush1.bf16.msra.mxu0 %v2384
    %3385 = vmatprep.subr.bf16.mxu0 0
    %3386 = vmatpush1.bf16.msra.mxu0 %v2385
    %3387 = vmatprep.subr.bf16.mxu0 0
    %3388 = vmatpush1.bf16.msra.mxu0 %v2386
    %3389 = vmatprep.subr.bf16.mxu0 0
    %3390 = vmatpush1.bf16.msra.mxu0 %v2387
    %3391 = vmatprep.subr.bf16.mxu0 0
    %3392 = vmatpush1.bf16.msra.mxu0 %v2388
    %3393 = vmatprep.mubr.bf16.mxu0 %v305
    %3394 = vmatmul.mubr.bf16.gmra.mrb[0].mxu0 %v304
    %v3395 = vpop.f32.mrb[0].mxu0
    %v3396 = vadd.f32 %v3356, %v3395
    %v3397 = vpop.f32.mrb[0].mxu0
    %v3398 = vpop.f32.mrb[0].mxu0
    %v3399 = vpop.f32.mrb[0].mxu0
    %3400 = vdwg.mxu0
    %3401 = vmatprep.subr.bf16.mxu0 0
    %3402 = vmatpush1.bf16.msra.mxu0 %v2389
    %3403 = vmatprep.subr.bf16.mxu0 0
    %3404 = vmatpush1.bf16.msra.mxu0 %v2390
    %3405 = vmatprep.subr.bf16.mxu0 0
    %3406 = vmatpush1.bf16.msra.mxu0 %v2391
    %3407 = vmatprep.subr.bf16.mxu0 0
    %3408 = vmatpush1.bf16.msra.mxu0 %v2392
    %3409 = vmatprep.subr.bf16.mxu0 0
    %3410 = vmatpush1.bf16.msra.mxu0 %v2393
    %3411 = vmatprep.subr.bf16.mxu0 0
    %3412 = vmatpush1.bf16.msra.mxu0 %v2394
    %3413 = vmatprep.subr.bf16.mxu0 0
    %3414 = vmatpush1.bf16.msra.mxu0 %v2395
    %3415 = vmatprep.subr.bf16.mxu0 0
    %3416 = vmatpush1.bf16.msra.mxu0 %v2396
    %3417 = vmatprep.subr.bf16.mxu0 0
    %3418 = vmatpush1.bf16.msra.mxu0 %v2397
    %3419 = vmatprep.subr.bf16.mxu0 0
    %3420 = vmatpush1.bf16.msra.mxu0 %v2398
    %3421 = vmatprep.subr.bf16.mxu0 0
    %3422 = vmatpush1.bf16.msra.mxu0 %v2399
    %3423 = vmatprep.subr.bf16.mxu0 0
    %3424 = vmatpush1.bf16.msra.mxu0 %v2400
    %3425 = vmatprep.subr.bf16.mxu0 0
    %3426 = vmatpush1.bf16.msra.mxu0 %v2401
    %3427 = vmatprep.subr.bf16.mxu0 0
    %3428 = vmatpush1.bf16.msra.mxu0 %v2402
    %3429 = vmatprep.subr.bf16.mxu0 0
    %3430 = vmatpush1.bf16.msra.mxu0 %v2403
    %3431 = vmatprep.subr.bf16.mxu0 0
    %3432 = vmatpush1.bf16.msra.mxu0 %v2404
    %3433 = vmatprep.mubr.bf16.mxu0 %v307
    %3434 = vmatmul.mubr.bf16.gmra.mrb[0].mxu0 %v306
    %v3435 = vpop.f32.mrb[0].mxu0
    %v3436 = vadd.f32 %v3396, %v3435
    %v3437 = vpop.f32.mrb[0].mxu0
    %v3438 = vpop.f32.mrb[0].mxu0
    %v3439 = vpop.f32.mrb[0].mxu0
    %3440 = vdwg.mxu0
    %3441 = vmatprep.subr.bf16.mxu0 0
    %3442 = vmatpush1.bf16.msra.mxu0 %v2405
    %3443 = vmatprep.subr.bf16.mxu0 0
    %3444 = vmatpush1.bf16.msra.mxu0 %v2406
    %3445 = vmatprep.subr.bf16.mxu0 0
    %3446 = vmatpush1.bf16.msra.mxu0 %v2407
    %3447 = vmatprep.subr.bf16.mxu0 0
    %3448 = vmatpush1.bf16.msra.mxu0 %v2408
    %3449 = vmatprep.subr.bf16.mxu0 0
    %3450 = vmatpush1.bf16.msra.mxu0 %v2409
    %3451 = vmatprep.subr.bf16.mxu0 0
    %3452 = vmatpush1.bf16.msra.mxu0 %v2410
    %3453 = vmatprep.subr.bf16.mxu0 0
    %3454 = vmatpush1.bf16.msra.mxu0 %v2411
    %3455 = vmatprep.subr.bf16.mxu0 0
    %3456 = vmatpush1.bf16.msra.mxu0 %v2412
    %3457 = vmatprep.subr.bf16.mxu0 0
    %3458 = vmatpush1.bf16.msra.mxu0 %v2413
    %3459 = vmatprep.subr.bf16.mxu0 0
    %3460 = vmatpush1.bf16.msra.mxu0 %v2414
    %3461 = vmatprep.subr.bf16.mxu0 0
    %3462 = vmatpush1.bf16.msra.mxu0 %v2415
    %3463 = vmatprep.subr.bf16.mxu0 0
    %3464 = vmatpush1.bf16.msra.mxu0 %v2416
    %3465 = vmatprep.subr.bf16.mxu0 0
    %3466 = vmatpush1.bf16.msra.mxu0 0
    %3467 = vmatprep.subr.bf16.mxu0 0
    %3468 = vmatpush1.bf16.msra.mxu0 0
    %3469 = vmatprep.subr.bf16.mxu0 0
    %3470 = vmatpush1.bf16.msra.mxu0 0
    %3471 = vmatprep.subr.bf16.mxu0 0
    %3472 = vmatpush1.bf16.msra.mxu0 0
    %3473 = vmatprep.mubr.bf16.mxu0 %v2719
    %3474 = vmatmul.mubr.bf16.gmra.mrb[0].mxu0 %v308
    %v3475 = vpop.f32.mrb[0].mxu0
    %v3476 = vadd.f32 %v3436, %v3475
    %v3477 = vpop.f32.mrb[0].mxu0
    %v3478 = vpop.f32.mrb[0].mxu0
    %v3479 = vpop.f32.mrb[0].mxu0
    %3480 = vdwg.mxu0
    %vm3481 = vcmask 1041408
    %v3482 = vsel %vm3481, %v3476, -inf
    %3483 = vmax.xlane.f32.xlu0 %v3482
    %v3484 = vpop.xlane.xlu0 %3483
    %v3485 = vsub.f32 %v3476, %v3484
    %v3486 = vmul.f32 %v3485, 1.442695
    %v3487 = vpow.pop %v3486
    %v3488 = vsel %vm3481, %v3487, 0.0
    %3489 = vadd.xlane.f32.xlu0 %v3488
    %v3490 = vpop.xlane.xlu0 %3489
    %v3491 = vlog2.pop %v3490
    %v3492 = vmul.f32 %v3491, 0.6931472
    %v3493 = vsub.f32 %v3485, %v3492
    %3494 = vst [vmem:[#allocation8] sm:$0x3] %v3493
    // Predicated region
    $region26: #{tpu_custom_call.1} parent=1 // pred_check
      _
    $region27: #{tpu_custom_call.1} parent=1 // pred_check_branch
      %3496 = sbr.rel (0) target = $region29
    $region28: #{tpu_custom_call.1} parent=1 // pred_region
      %s3498 = ssub.s32 32, 32
      %3499 = vsyncadd [#allocation4], %s3498
      %s3501 = sshll.u32 [#allocation8], 4
      %s3502 = int_to_ptr.vmem [resolvable:$true] %s3501
      %3504 = dma.vmem_to_hbm [thread:$0]  %s3502, 32, %s3, [#allocation4]
    $region29: #{tpu_custom_call.1} parent=1 // pred_fallthru
      _
    // Predicated region
    $region30: #{tpu_custom_call.1} parent=1 // pred_check
      _
    $region31: #{tpu_custom_call.1} parent=1 // pred_check_branch
      %3506 = sbr.rel (0) target = $region33
    $region32: #{tpu_custom_call.1} parent=1 // pred_region
      %3507 = dma.done [#allocation4], 32
    $region33: #{tpu_custom_call.1} parent=1 // pred_fallthru
      _
    %3508 = vsyncpa [#allocation3], 1
    %3509 = vsyncpa [#allocation6], 1
    %3510 = vsyncpa [#allocation4], 1

</llo_original>
